<compile_context>
chip_gen: v6e
topology: v6e:2x2x1
jax: 0.10.0
libtpu: 0.0.40
codegen_flags: <defaults>
</compile_context>

<pallas_src>
import jax
import jax.numpy as jnp
from jax.experimental import pallas as pl
from jax.experimental.pallas import tpu as pltpu


def _round_up(x, m):
    return (x + m - 1) // m * m


# ----------------------------------------------------------------------------
# Parameter packing (review fix #2)
# ----------------------------------------------------------------------------
def build_packed_params(rnn_params, fc_w, fc_b, H, i_pad):
    """Concatenate all pre-transposed weights/biases into one (rows, H) array.

    Every block is zero-padded to a multiple of 8 rows so the kernel's static
    row slices are sublane-tile aligned.  Returns (packed, offsets dict).
    """
    blocks, offsets = [], {}
    cur = 0

    def add(name, arr):
        nonlocal cur
        arr = arr.astype(jnp.float32)
        r = arr.shape[0]
        rp = _round_up(r, 8)
        blocks.append(jnp.pad(arr, ((0, rp - r), (0, 0))))
        offsets[name] = cur
        cur += rp

    for layer, (w_ih, w_hh, b_ih, b_hh) in enumerate(rnn_params):
        wih_t = w_ih.T                                    # (D_in, H)
        if layer == 0 and wih_t.shape[0] < i_pad:
            # zero-pad contraction dim to i_pad (x lanes are padded to match)
            wih_t = jnp.pad(wih_t, ((0, i_pad - wih_t.shape[0]), (0, 0)))
        add(f"wih{layer}", wih_t)
        add(f"whh{layer}", w_hh.T)                        # (H, H)
        add(f"b{layer}", (b_ih + b_hh).reshape(1, H))     # combined bias
    add("fcw", fc_w.reshape(1, H))
    add("fcb", jnp.pad(fc_b.reshape(1, 1), ((0, 0), (0, H - 1))))

    return jnp.concatenate(blocks, axis=0), offsets


# ----------------------------------------------------------------------------
# Fused Pallas kernel
# ----------------------------------------------------------------------------
def make_fused_kernel(num_layers, B, T, H, in_rows, offsets):
    """`num_layers` tanh-RNN layers + Linear(H, 1) + sigmoid, fully fused."""

    def kernel(x_ref, p_ref, out_ref, seq_ref):
        # x_ref  : (T*B, in_rows[0]) time-major input, row = t*B + b
        # p_ref  : (rows, H) packed parameters
        # out_ref: (B, 1)
        # seq_ref: (T*B, H) VMEM scratch holding a layer's full output sequence
        h_in = x_ref[...]
        h = None
        for layer in range(num_layers):
            d_in = in_rows[layer]
            o_w, o_u, o_b = (offsets[f"wih{layer}"], offsets[f"whh{layer}"],
                             offsets[f"b{layer}"])
            wih = p_ref[o_w:o_w + d_in, :]               # (d_in, H)
            whh = p_ref[o_u:o_u + H, :]                  # (H, H), kept in vregs
            b = p_ref[o_b:o_b + 1, :]                    # (1, H) == b_ih + b_hh
            last_layer = layer == num_layers - 1

            # --- hoisted input projection: one matmul per layer, bias folded ---
            pre = jnp.dot(h_in, wih, preferred_element_type=jnp.float32) + b

            # --- serial recurrence; t=0 peeled since h0 == 0 (review fix #3) ---
            h = jnp.tanh(pre[0:B, :])
            if not last_layer:
                seq_ref[0:B, :] = h
            for t in range(1, T):                        # T small & static: unroll
                h = jnp.tanh(pre[t * B:(t + 1) * B, :] +
                             jnp.dot(h, whh, preferred_element_type=jnp.float32))
                if not last_layer:
                    seq_ref[t * B:(t + 1) * B, :] = h    # never leaves VMEM
            if not last_layer:
                h_in = seq_ref[...]                      # (T*B, H) time-major

        # --- FC(H -> 1) + sigmoid as VPU mul + lane reduction (no MXU) ---
        fc_w = p_ref[offsets["fcw"]:offsets["fcw"] + 1, :]          # (1, H)
        fc_b = p_ref[offsets["fcb"]:offsets["fcb"] + 1, :][:, 0:1]  # (1, 1)
        logits = jnp.sum(h * fc_w, axis=-1, keepdims=True) + fc_b
        out_ref[...] = jax.nn.sigmoid(logits)

    return kernel


# ----------------------------------------------------------------------------
# Wrapper
# ----------------------------------------------------------------------------
def smsrnn_forward(x_btd, rnn_params, fc_w, fc_b):
    """x_btd: (B, T, input_size) float32 -> (B, 1) float32.  One pallas_call."""
    B, T, I = x_btd.shape
    H = rnn_params[0][1].shape[0]
    num_layers = len(rnn_params)
    i_pad = _round_up(I, 8)

    # Time-major flatten (review fix #1): row = t*B + b.  Tiny wrapper-side op.
    x_tm = jnp.transpose(x_btd.astype(jnp.float32), (1, 0, 2)).reshape(T * B, I)
    if i_pad > I:
        x_tm = jnp.pad(x_tm, ((0, 0), (0, i_pad - I)))

    packed, offsets = build_packed_params(rnn_params, fc_w, fc_b, H, i_pad)
    in_rows = [i_pad] + [H] * (num_layers - 1)

    vmem = pl.BlockSpec(memory_space=pltpu.MemorySpace.VMEM)
    return pl.pallas_call(
        make_fused_kernel(num_layers, B, T, H, in_rows, offsets),
        out_shape=jax.ShapeDtypeStruct((B, 1), jnp.float32),
        in_specs=[vmem, vmem],
        out_specs=vmem,
        scratch_shapes=[pltpu.VMEM((T * B, H), jnp.float32)],
    )(x_tm, packed)


# ----------------------------------------------------------------------------
# Pure-JAX reference (for correctness check) — precision pinned to HIGHEST
# ----------------------------------------------------------------------------
def smsrnn_reference(x, rnn_params, fc_w, fc_b):
    hi = jax.lax.Precision.HIGHEST
    B, T, _ = x.shape
    layer_in = x.astype(jnp.float32)
    for (w_ih, w_hh, b_ih, b_hh) in rnn_params:
        H = w_hh.shape[0]
        h = jnp.zeros((B, H), jnp.float32)
        outs = []
        for t in range(T):
            h = jnp.tanh(jnp.dot(layer_in[:, t, :], w_ih.T, precision=hi) + b_ih +
                         jnp.dot(h, w_hh.T, precision=hi) + b_hh)
            outs.append(h)
        layer_in = jnp.stack(outs, axis=1)
    h_last = layer_in[:, -1, :]
    return jax.nn.sigmoid(jnp.dot(h_last, fc_w.T, precision=hi) + fc_b)


# ----------------------------------------------------------------------------
# Main
# ----------------------------------------------------------------------------
if __name__ == "__main__":
    input_size, hidden_size, num_layers = 4, 32, 2
    batch, seq = 2, 8

    key = jax.random.PRNGKey(0)
    keys = iter(jax.random.split(key, 4 * num_layers + 3))
    bound = 1.0 / (hidden_size ** 0.5)

    rnn_params = []
    for layer in range(num_layers):
        d_in = input_size if layer == 0 else hidden_size
        w_ih = jax.random.uniform(next(keys), (hidden_size, d_in),
                                  jnp.float32, -bound, bound)
        w_hh = jax.random.uniform(next(keys), (hidden_size, hidden_size),
                                  jnp.float32, -bound, bound)
        b_ih = jax.random.uniform(next(keys), (hidden_size,),
                                  jnp.float32, -bound, bound)
        b_hh = jax.random.uniform(next(keys), (hidden_size,),
                                  jnp.float32, -bound, bound)
        rnn_params.append((w_ih, w_hh, b_ih, b_hh))

    fc_w = jax.random.uniform(next(keys), (1, hidden_size),
                              jnp.float32, -bound, bound)
    fc_b = jax.random.uniform(next(keys), (1,), jnp.float32, -bound, bound)

    x = jax.random.normal(next(keys), (batch, seq, input_size), jnp.float32)

    out = smsrnn_forward(x, rnn_params, fc_w, fc_b)
    out = jax.block_until_ready(out)

    ref = smsrnn_reference(x, rnn_params, fc_w, fc_b)
    assert out.shape == (batch, 1), out.shape
    # 1e-4 tolerance: MXU f32 matmul pass count may differ from XLA's HIGHEST
    # path across TPU generations (per perf review correctness note).
    assert jnp.allclose(out, ref, atol=1e-4, rtol=1e-4), (out, ref)

    print("KERNEL_OK")
</pallas_src>

<mosaic_0001>
module attributes {stable_mosaic.version = 11 : i64} {
  func.func @kernel(%arg0: memref<16x8xf32, #tpu.memory_space<vmem>>, %arg1: memref<136x32xf32, #tpu.memory_space<vmem>>, %arg2: memref<2x1xf32, #tpu.memory_space<vmem>>, %arg3: memref<16x32xf32, #tpu.memory_space<vmem>>) attributes {dimension_semantics = [], scalar_prefetch = 0 : i64, scratch_operands = 1 : i64, tpu.core_type = #tpu.core_type<tc>} {
    %c0 = arith.constant 0 : index
    %c0_0 = arith.constant 0 : index
    %0 = vector.load %arg0[%c0, %c0_0] : memref<16x8xf32, #tpu.memory_space<vmem>>, vector<16x8xf32>
    %c0_1 = arith.constant 0 : index
    %c0_2 = arith.constant 0 : index
    %1 = vector.load %arg1[%c0_1, %c0_2] : memref<136x32xf32, #tpu.memory_space<vmem>>, vector<8x32xf32>
    %c8 = arith.constant 8 : index
    %c0_3 = arith.constant 0 : index
    %2 = vector.load %arg1[%c8, %c0_3] : memref<136x32xf32, #tpu.memory_space<vmem>>, vector<32x32xf32>
    %c40 = arith.constant 40 : index
    %c0_4 = arith.constant 0 : index
    %3 = vector.load %arg1[%c40, %c0_4] : memref<136x32xf32, #tpu.memory_space<vmem>>, vector<1x32xf32>
    %cst = arith.constant dense<0.000000e+00> : vector<16x32xf32>
    %4 = tpu.matmul %0, %1, %cst {dimension_numbers = #tpu.dot_dimension_numbers<[1], [0], [0], [1], [0, 0, 1, 1], [], []>} : vector<16x8xf32>, vector<8x32xf32>, vector<16x32xf32> -> vector<16x32xf32>
    %5 = vector.broadcast %3 : vector<1x32xf32> to vector<16x32xf32>
    %6 = arith.addf %4, %5 : vector<16x32xf32>
    %7 = vector.extract_strided_slice %6 {offsets = [0, 0], sizes = [2, 32], strides = [1, 1]} : vector<16x32xf32> to vector<2x32xf32>
    %8 = math.tanh %7 : vector<2x32xf32>
    %c0_5 = arith.constant 0 : index
    %c0_6 = arith.constant 0 : index
    %9 = vector.load %arg3[%c0_5, %c0_6] : memref<16x32xf32, #tpu.memory_space<vmem>>, vector<2x32xf32>
    tpu.vector_store %arg3[%c0_5, %c0_6], %8 {strides = array<i32>} : memref<16x32xf32, #tpu.memory_space<vmem>>, vector<2x32xf32>,
    %10 = vector.extract_strided_slice %6 {offsets = [2, 0], sizes = [2, 32], strides = [1, 1]} : vector<16x32xf32> to vector<2x32xf32>
    %cst_7 = arith.constant dense<0.000000e+00> : vector<2x32xf32>
    %11 = tpu.matmul %8, %2, %cst_7 {dimension_numbers = #tpu.dot_dimension_numbers<[1], [0], [0], [1], [0, 0, 1, 1], [], []>} : vector<2x32xf32>, vector<32x32xf32>, vector<2x32xf32> -> vector<2x32xf32>
    %12 = arith.addf %10, %11 : vector<2x32xf32>
    %13 = math.tanh %12 : vector<2x32xf32>
    %c2 = arith.constant 2 : index
    %c0_8 = arith.constant 0 : index
    %14 = vector.load %arg3[%c2, %c0_8] : memref<16x32xf32, #tpu.memory_space<vmem>>, vector<2x32xf32>
    tpu.vector_store %arg3[%c2, %c0_8], %13 {strides = array<i32>} : memref<16x32xf32, #tpu.memory_space<vmem>>, vector<2x32xf32>,
    %15 = vector.extract_strided_slice %6 {offsets = [4, 0], sizes = [2, 32], strides = [1, 1]} : vector<16x32xf32> to vector<2x32xf32>
    %cst_9 = arith.constant dense<0.000000e+00> : vector<2x32xf32>
    %16 = tpu.matmul %13, %2, %cst_9 {dimension_numbers = #tpu.dot_dimension_numbers<[1], [0], [0], [1], [0, 0, 1, 1], [], []>} : vector<2x32xf32>, vector<32x32xf32>, vector<2x32xf32> -> vector<2x32xf32>
    %17 = arith.addf %15, %16 : vector<2x32xf32>
    %18 = math.tanh %17 : vector<2x32xf32>
    %c4 = arith.constant 4 : index
    %c0_10 = arith.constant 0 : index
    %19 = vector.load %arg3[%c4, %c0_10] : memref<16x32xf32, #tpu.memory_space<vmem>>, vector<2x32xf32>
    tpu.vector_store %arg3[%c4, %c0_10], %18 {strides = array<i32>} : memref<16x32xf32, #tpu.memory_space<vmem>>, vector<2x32xf32>,
    %20 = vector.extract_strided_slice %6 {offsets = [6, 0], sizes = [2, 32], strides = [1, 1]} : vector<16x32xf32> to vector<2x32xf32>
    %cst_11 = arith.constant dense<0.000000e+00> : vector<2x32xf32>
    %21 = tpu.matmul %18, %2, %cst_11 {dimension_numbers = #tpu.dot_dimension_numbers<[1], [0], [0], [1], [0, 0, 1, 1], [], []>} : vector<2x32xf32>, vector<32x32xf32>, vector<2x32xf32> -> vector<2x32xf32>
    %22 = arith.addf %20, %21 : vector<2x32xf32>
    %23 = math.tanh %22 : vector<2x32xf32>
    %c6 = arith.constant 6 : index
    %c0_12 = arith.constant 0 : index
    %24 = vector.load %arg3[%c6, %c0_12] : memref<16x32xf32, #tpu.memory_space<vmem>>, vector<2x32xf32>
    tpu.vector_store %arg3[%c6, %c0_12], %23 {strides = array<i32>} : memref<16x32xf32, #tpu.memory_space<vmem>>, vector<2x32xf32>,
    %25 = vector.extract_strided_slice %6 {offsets = [8, 0], sizes = [2, 32], strides = [1, 1]} : vector<16x32xf32> to vector<2x32xf32>
    %cst_13 = arith.constant dense<0.000000e+00> : vector<2x32xf32>
    %26 = tpu.matmul %23, %2, %cst_13 {dimension_numbers = #tpu.dot_dimension_numbers<[1], [0], [0], [1], [0, 0, 1, 1], [], []>} : vector<2x32xf32>, vector<32x32xf32>, vector<2x32xf32> -> vector<2x32xf32>
    %27 = arith.addf %25, %26 : vector<2x32xf32>
    %28 = math.tanh %27 : vector<2x32xf32>
    %c8_14 = arith.constant 8 : index
    %c0_15 = arith.constant 0 : index
    %29 = vector.load %arg3[%c8_14, %c0_15] : memref<16x32xf32, #tpu.memory_space<vmem>>, vector<2x32xf32>
    tpu.vector_store %arg3[%c8_14, %c0_15], %28 {strides = array<i32>} : memref<16x32xf32, #tpu.memory_space<vmem>>, vector<2x32xf32>,
    %30 = vector.extract_strided_slice %6 {offsets = [10, 0], sizes = [2, 32], strides = [1, 1]} : vector<16x32xf32> to vector<2x32xf32>
    %cst_16 = arith.constant dense<0.000000e+00> : vector<2x32xf32>
    %31 = tpu.matmul %28, %2, %cst_16 {dimension_numbers = #tpu.dot_dimension_numbers<[1], [0], [0], [1], [0, 0, 1, 1], [], []>} : vector<2x32xf32>, vector<32x32xf32>, vector<2x32xf32> -> vector<2x32xf32>
    %32 = arith.addf %30, %31 : vector<2x32xf32>
    %33 = math.tanh %32 : vector<2x32xf32>
    %c10 = arith.constant 10 : index
    %c0_17 = arith.constant 0 : index
    %34 = vector.load %arg3[%c10, %c0_17] : memref<16x32xf32, #tpu.memory_space<vmem>>, vector<2x32xf32>
    tpu.vector_store %arg3[%c10, %c0_17], %33 {strides = array<i32>} : memref<16x32xf32, #tpu.memory_space<vmem>>, vector<2x32xf32>,
    %35 = vector.extract_strided_slice %6 {offsets = [12, 0], sizes = [2, 32], strides = [1, 1]} : vector<16x32xf32> to vector<2x32xf32>
    %cst_18 = arith.constant dense<0.000000e+00> : vector<2x32xf32>
    %36 = tpu.matmul %33, %2, %cst_18 {dimension_numbers = #tpu.dot_dimension_numbers<[1], [0], [0], [1], [0, 0, 1, 1], [], []>} : vector<2x32xf32>, vector<32x32xf32>, vector<2x32xf32> -> vector<2x32xf32>
    %37 = arith.addf %35, %36 : vector<2x32xf32>
    %38 = math.tanh %37 : vector<2x32xf32>
    %c12 = arith.constant 12 : index
    %c0_19 = arith.constant 0 : index
    %39 = vector.load %arg3[%c12, %c0_19] : memref<16x32xf32, #tpu.memory_space<vmem>>, vector<2x32xf32>
    tpu.vector_store %arg3[%c12, %c0_19], %38 {strides = array<i32>} : memref<16x32xf32, #tpu.memory_space<vmem>>, vector<2x32xf32>,
    %40 = vector.extract_strided_slice %6 {offsets = [14, 0], sizes = [2, 32], strides = [1, 1]} : vector<16x32xf32> to vector<2x32xf32>
    %cst_20 = arith.constant dense<0.000000e+00> : vector<2x32xf32>
    %41 = tpu.matmul %38, %2, %cst_20 {dimension_numbers = #tpu.dot_dimension_numbers<[1], [0], [0], [1], [0, 0, 1, 1], [], []>} : vector<2x32xf32>, vector<32x32xf32>, vector<2x32xf32> -> vector<2x32xf32>
    %42 = arith.addf %40, %41 : vector<2x32xf32>
    %43 = math.tanh %42 : vector<2x32xf32>
    %c14 = arith.constant 14 : index
    %c0_21 = arith.constant 0 : index
    %44 = vector.load %arg3[%c14, %c0_21] : memref<16x32xf32, #tpu.memory_space<vmem>>, vector<2x32xf32>
    tpu.vector_store %arg3[%c14, %c0_21], %43 {strides = array<i32>} : memref<16x32xf32, #tpu.memory_space<vmem>>, vector<2x32xf32>,
    %c0_22 = arith.constant 0 : index
    %c0_23 = arith.constant 0 : index
    %45 = vector.load %arg3[%c0_22, %c0_23] : memref<16x32xf32, #tpu.memory_space<vmem>>, vector<16x32xf32>
    %c48 = arith.constant 48 : index
    %c0_24 = arith.constant 0 : index
    %46 = vector.load %arg1[%c48, %c0_24] : memref<136x32xf32, #tpu.memory_space<vmem>>, vector<32x32xf32>
    %c80 = arith.constant 80 : index
    %c0_25 = arith.constant 0 : index
    %47 = vector.load %arg1[%c80, %c0_25] : memref<136x32xf32, #tpu.memory_space<vmem>>, vector<32x32xf32>
    %c112 = arith.constant 112 : index
    %c0_26 = arith.constant 0 : index
    %48 = vector.load %arg1[%c112, %c0_26] : memref<136x32xf32, #tpu.memory_space<vmem>>, vector<1x32xf32>
    %cst_27 = arith.constant dense<0.000000e+00> : vector<16x32xf32>
    %49 = tpu.matmul %45, %46, %cst_27 {dimension_numbers = #tpu.dot_dimension_numbers<[1], [0], [0], [1], [0, 0, 1, 1], [], []>} : vector<16x32xf32>, vector<32x32xf32>, vector<16x32xf32> -> vector<16x32xf32>
    %50 = vector.broadcast %48 : vector<1x32xf32> to vector<16x32xf32>
    %51 = arith.addf %49, %50 : vector<16x32xf32>
    %52 = vector.extract_strided_slice %51 {offsets = [0, 0], sizes = [2, 32], strides = [1, 1]} : vector<16x32xf32> to vector<2x32xf32>
    %53 = math.tanh %52 : vector<2x32xf32>
    %54 = vector.extract_strided_slice %51 {offsets = [2, 0], sizes = [2, 32], strides = [1, 1]} : vector<16x32xf32> to vector<2x32xf32>
    %cst_28 = arith.constant dense<0.000000e+00> : vector<2x32xf32>
    %55 = tpu.matmul %53, %47, %cst_28 {dimension_numbers = #tpu.dot_dimension_numbers<[1], [0], [0], [1], [0, 0, 1, 1], [], []>} : vector<2x32xf32>, vector<32x32xf32>, vector<2x32xf32> -> vector<2x32xf32>
    %56 = arith.addf %54, %55 : vector<2x32xf32>
    %57 = math.tanh %56 : vector<2x32xf32>
    %58 = vector.extract_strided_slice %51 {offsets = [4, 0], sizes = [2, 32], strides = [1, 1]} : vector<16x32xf32> to vector<2x32xf32>
    %cst_29 = arith.constant dense<0.000000e+00> : vector<2x32xf32>
    %59 = tpu.matmul %57, %47, %cst_29 {dimension_numbers = #tpu.dot_dimension_numbers<[1], [0], [0], [1], [0, 0, 1, 1], [], []>} : vector<2x32xf32>, vector<32x32xf32>, vector<2x32xf32> -> vector<2x32xf32>
    %60 = arith.addf %58, %59 : vector<2x32xf32>
    %61 = math.tanh %60 : vector<2x32xf32>
    %62 = vector.extract_strided_slice %51 {offsets = [6, 0], sizes = [2, 32], strides = [1, 1]} : vector<16x32xf32> to vector<2x32xf32>
    %cst_30 = arith.constant dense<0.000000e+00> : vector<2x32xf32>
    %63 = tpu.matmul %61, %47, %cst_30 {dimension_numbers = #tpu.dot_dimension_numbers<[1], [0], [0], [1], [0, 0, 1, 1], [], []>} : vector<2x32xf32>, vector<32x32xf32>, vector<2x32xf32> -> vector<2x32xf32>
    %64 = arith.addf %62, %63 : vector<2x32xf32>
    %65 = math.tanh %64 : vector<2x32xf32>
    %66 = vector.extract_strided_slice %51 {offsets = [8, 0], sizes = [2, 32], strides = [1, 1]} : vector<16x32xf32> to vector<2x32xf32>
    %cst_31 = arith.constant dense<0.000000e+00> : vector<2x32xf32>
    %67 = tpu.matmul %65, %47, %cst_31 {dimension_numbers = #tpu.dot_dimension_numbers<[1], [0], [0], [1], [0, 0, 1, 1], [], []>} : vector<2x32xf32>, vector<32x32xf32>, vector<2x32xf32> -> vector<2x32xf32>
    %68 = arith.addf %66, %67 : vector<2x32xf32>
    %69 = math.tanh %68 : vector<2x32xf32>
    %70 = vector.extract_strided_slice %51 {offsets = [10, 0], sizes = [2, 32], strides = [1, 1]} : vector<16x32xf32> to vector<2x32xf32>
    %cst_32 = arith.constant dense<0.000000e+00> : vector<2x32xf32>
    %71 = tpu.matmul %69, %47, %cst_32 {dimension_numbers = #tpu.dot_dimension_numbers<[1], [0], [0], [1], [0, 0, 1, 1], [], []>} : vector<2x32xf32>, vector<32x32xf32>, vector<2x32xf32> -> vector<2x32xf32>
    %72 = arith.addf %70, %71 : vector<2x32xf32>
    %73 = math.tanh %72 : vector<2x32xf32>
    %74 = vector.extract_strided_slice %51 {offsets = [12, 0], sizes = [2, 32], strides = [1, 1]} : vector<16x32xf32> to vector<2x32xf32>
    %cst_33 = arith.constant dense<0.000000e+00> : vector<2x32xf32>
    %75 = tpu.matmul %73, %47, %cst_33 {dimension_numbers = #tpu.dot_dimension_numbers<[1], [0], [0], [1], [0, 0, 1, 1], [], []>} : vector<2x32xf32>, vector<32x32xf32>, vector<2x32xf32> -> vector<2x32xf32>
    %76 = arith.addf %74, %75 : vector<2x32xf32>
    %77 = math.tanh %76 : vector<2x32xf32>
    %78 = vector.extract_strided_slice %51 {offsets = [14, 0], sizes = [2, 32], strides = [1, 1]} : vector<16x32xf32> to vector<2x32xf32>
    %cst_34 = arith.constant dense<0.000000e+00> : vector<2x32xf32>
    %79 = tpu.matmul %77, %47, %cst_34 {dimension_numbers = #tpu.dot_dimension_numbers<[1], [0], [0], [1], [0, 0, 1, 1], [], []>} : vector<2x32xf32>, vector<32x32xf32>, vector<2x32xf32> -> vector<2x32xf32>
    %80 = arith.addf %78, %79 : vector<2x32xf32>
    %81 = math.tanh %80 : vector<2x32xf32>
    %c120 = arith.constant 120 : index
    %c0_35 = arith.constant 0 : index
    %82 = vector.load %arg1[%c120, %c0_35] : memref<136x32xf32, #tpu.memory_space<vmem>>, vector<1x32xf32>
    %c128 = arith.constant 128 : index
    %c0_36 = arith.constant 0 : index
    %83 = vector.load %arg1[%c128, %c0_36] : memref<136x32xf32, #tpu.memory_space<vmem>>, vector<1x32xf32>
    %84 = vector.extract_strided_slice %83 {offsets = [0, 0], sizes = [1, 1], strides = [1, 1]} : vector<1x32xf32> to vector<1x1xf32>
    %85 = vector.broadcast %82 : vector<1x32xf32> to vector<2x32xf32>
    %86 = arith.mulf %81, %85 : vector<2x32xf32>
    %cst_37 = arith.constant dense<0.000000e+00> : vector<2xf32>
    %87 = vector.multi_reduction <add>, %86, %cst_37 [1] : vector<2x32xf32> to vector<2xf32>
    %88 = vector.shape_cast %87 : vector<2xf32> to vector<2x1xf32>
    %89 = vector.broadcast %84 : vector<1x1xf32> to vector<2x1xf32>
    %90 = arith.addf %88, %89 : vector<2x1xf32>
    %91 = arith.negf %90 : vector<2x1xf32>
    %92 = math.exp %91 : vector<2x1xf32>
    %cst_38 = arith.constant 1.000000e+00 : f32
    %93 = vector.broadcast %cst_38 : f32 to vector<2x1xf32>
    %94 = arith.addf %93, %92 : vector<2x1xf32>
    %95 = arith.divf %93, %94 : vector<2x1xf32>
    %c0_39 = arith.constant 0 : index
    %c0_40 = arith.constant 0 : index
    %96 = vector.load %arg2[%c0_39, %c0_40] : memref<2x1xf32, #tpu.memory_space<vmem>>, vector<2x1xf32>
    tpu.vector_store %arg2[%c0_39, %c0_40], %95 {strides = array<i32>} : memref<2x1xf32, #tpu.memory_space<vmem>>, vector<2x1xf32>,
    return
  }
}

</mosaic_0001>

<llo_original>
// kernel: tpu_custom_call.1
$region0: #{tpu_custom_call.1}
  #allocation0 [shape = 'u32[]', space=smem, size = 0x4, offset = 0x4, fixed_abs, tag = 'smem constant byte address 0x4 - core index']
  #allocation1 [shape = 'u32[144,128]{1,0:T(1,128)}', space=vmem, size = 0x12000, scoped, tag = 'internal scratch']
  #allocation2 [shape = 'f32[16,32]{1,0:T(8,128)}', space=vmem, size = 0x2000, scoped, tag = 'scratch operand']
  %s0 = inlined_call_operand.vmem [shape: f32[16,8], index: 0, kind: input, shape index: {}]
  %s1 = inlined_call_operand.vmem [shape: f32[136,32], index: 1, kind: input, shape index: {}]
  %s2 = inlined_call_operand.vmem [shape: f32[2,1], index: 2, kind: output, shape index: {}]
  %s3 = sld [smem:[#allocation0]]
  $region18: #{tpu_custom_call.1} parent=0
    _
  %s5 = ssub.s32 1, %s3
  %s6 = scalar_select 0, %s5, %s3
  // Predicated region
  $region2: #{tpu_custom_call.1} parent=0 // pred_check
    _
  $region3: #{tpu_custom_call.1} parent=0 // pred_check_branch
    %8 = sbr.rel (0) target = $region5
  $region4: #{tpu_custom_call.1} parent=0 // pred_region
    _
  $region5: #{tpu_custom_call.1} parent=0 // pred_fallthru
    _
  // Predicated region
  $region6: #{tpu_custom_call.1} parent=0 // pred_check
    _
  $region7: #{tpu_custom_call.1} parent=0 // pred_check_branch
    %10 = sbr.rel (0) target = $region9
  $region8: #{tpu_custom_call.1} parent=0 // pred_region
    _
  $region9: #{tpu_custom_call.1} parent=0 // pred_fallthru
    _
  %v11 = vld [vmem:[%s0] sm:$0xff]
  %v12 = vld [vmem:[%s0 + $0x8] sm:$0xff]
  %v13 = vld [vmem:[%s1] sm:$0xff]
  %v14 = vld [vmem:[%s1 + $0x8] sm:$0xff]
  %v15 = vld [vmem:[%s1 + $0x10] sm:$0xff]
  %v16 = vld [vmem:[%s1 + $0x18] sm:$0xff]
  %v17 = vld [vmem:[%s1 + $0x20] sm:$0xff]
  %v18 = vld [vmem:[%s1 + $0x28] sm:$0x1]
  %v19 = vlaneseq
  %v20 = vshrl.u32 %v19, 7
  %v21 = vsub.s32 0, %v20
  %v22 = vrot.slane %v18, %v21
  %vm23 = vcmask 64512
  %v25 = vsel %vm23, %v11, 0
  %v28 = vsel %vm23, %v12, 0
  %30 = vmatprep.subr.mxu0 0.0
  %31 = vmatpush1.msra.mxu0 0.0
  %32 = vmatprep.subr.mxu0 0.0
  %33 = vmatpush1.msra.mxu0 0.0
  %34 = vmatprep.subr.mxu0 0.0
  %35 = vmatpush1.msra.mxu0 0.0
  %36 = vmatprep.subr.mxu0 0.0
  %37 = vmatpush1.msra.mxu0 0.0
  %38 = vmatprep.subr.mxu0 0.0
  %39 = vmatpush1.msra.mxu0 0.0
  %40 = vmatprep.subr.mxu0 0.0
  %41 = vmatpush1.msra.mxu0 0.0
  %42 = vmatprep.subr.mxu0 0.0
  %43 = vmatpush1.msra.mxu0 0.0
  %44 = vmatprep.subr.mxu0 0.0
  %45 = vmatpush1.msra.mxu0 0.0
  %46 = vmatprep.subr.mxu0 0.0
  %47 = vmatpush1.msra.mxu0 0.0
  %48 = vmatprep.subr.mxu0 0.0
  %49 = vmatpush1.msra.mxu0 0.0
  %50 = vmatprep.subr.mxu0 0.0
  %51 = vmatpush1.msra.mxu0 0.0
  %52 = vmatprep.subr.mxu0 0.0
  %53 = vmatpush1.msra.mxu0 0.0
  %54 = vmatprep.subr.mxu0 0.0
  %55 = vmatpush1.msra.mxu0 0.0
  %56 = vmatprep.subr.mxu0 0.0
  %57 = vmatpush1.msra.mxu0 0.0
  %58 = vmatprep.subr.mxu0 0.0
  %59 = vmatpush1.msra.mxu0 0.0
  %60 = vmatprep.subr.mxu0 0.0
  %61 = vmatpush1.msra.mxu0 %v13
  %62 = vmatprep.subr.mxu0 0.0
  %63 = vmatpush2.msra.mxu0 0.0
  %64 = vmatprep.subr.mxu0 0.0
  %65 = vmatpush2.msra.mxu0 0.0
  %66 = vmatprep.subr.mxu0 0.0
  %67 = vmatpush2.msra.mxu0 0.0
  %68 = vmatprep.subr.mxu0 0.0
  %69 = vmatpush2.msra.mxu0 0.0
  %70 = vmatprep.subr.mxu0 0.0
  %71 = vmatpush2.msra.mxu0 0.0
  %72 = vmatprep.subr.mxu0 0.0
  %73 = vmatpush2.msra.mxu0 0.0
  %74 = vmatprep.subr.mxu0 0.0
  %75 = vmatpush2.msra.mxu0 0.0
  %76 = vmatprep.subr.mxu0 0.0
  %77 = vmatpush2.msra.mxu0 0.0
  %78 = vmatprep.subr.mxu0 0.0
  %79 = vmatpush2.msra.mxu0 0.0
  %80 = vmatprep.subr.mxu0 0.0
  %81 = vmatpush2.msra.mxu0 0.0
  %82 = vmatprep.subr.mxu0 0.0
  %83 = vmatpush2.msra.mxu0 0.0
  %84 = vmatprep.subr.mxu0 0.0
  %85 = vmatpush2.msra.mxu0 0.0
  %86 = vmatprep.subr.mxu0 0.0
  %87 = vmatpush2.msra.mxu0 0.0
  %88 = vmatprep.subr.mxu0 0.0
  %89 = vmatpush2.msra.mxu0 0.0
  %90 = vmatprep.subr.mxu0 0.0
  %91 = vmatpush2.msra.mxu0 0.0
  %92 = vmatprep.subr.mxu0 0.0
  %93 = vmatpush2.msra.mxu0 0.0
  %94 = vmatprep.mubr.f32.mxu0 0.0
  %95 = vmatmul.mubr.f32.gmra.mxu0 %v25
  %v96 = vpop.f32.mrf.mxu0
  %v97 = vadd.f32 %v22, %v96
  %v98 = vpop.f32.mrf.mxu0
  %99 = vmatprep.mubr.f32.mxu0 0.0
  %100 = vmatmul.mubr.f32.gmra.mxu0 %v28
  %v101 = vpop.f32.mrf.mxu0
  %v102 = vadd.f32 %v22, %v101
  %v103 = vpop.f32.mrf.mxu0
  %104 = vdwg.mxu0
  %v105 = vtanh.pop %v97
  %vm106 = vcmask 254976
  %107 = vst.msk [vmem:[#allocation2] sm:$0x3] %vm106, %v105
  %vm108 = vcmask 261120
  %v110 = vsel %vm108, %v105, 0
  %112 = vmatprep.subr.mxu0 0.0
  %113 = vmatpush1.msra.mxu0 0.0
  %114 = vmatprep.subr.mxu0 0.0
  %115 = vmatpush1.msra.mxu0 0.0
  %116 = vmatprep.subr.mxu0 0.0
  %117 = vmatpush1.msra.mxu0 0.0
  %118 = vmatprep.subr.mxu0 0.0
  %119 = vmatpush1.msra.mxu0 0.0
  %120 = vmatprep.subr.mxu0 0.0
  %121 = vmatpush1.msra.mxu0 0.0
  %122 = vmatprep.subr.mxu0 0.0
  %123 = vmatpush1.msra.mxu0 0.0
  %124 = vmatprep.subr.mxu0 0.0
  %125 = vmatpush1.msra.mxu0 0.0
  %126 = vmatprep.subr.mxu0 0.0
  %127 = vmatpush1.msra.mxu0 0.0
  %128 = vmatprep.subr.mxu0 0.0
  %129 = vmatpush1.msra.mxu0 0.0
  %130 = vmatprep.subr.mxu0 0.0
  %131 = vmatpush1.msra.mxu0 0.0
  %132 = vmatprep.subr.mxu0 0.0
  %133 = vmatpush1.msra.mxu0 0.0
  %134 = vmatprep.subr.mxu0 0.0
  %135 = vmatpush1.msra.mxu0 0.0
  %136 = vmatprep.subr.mxu0 0.0
  %137 = vmatpush1.msra.mxu0 %v17
  %138 = vmatprep.subr.mxu0 0.0
  %139 = vmatpush1.msra.mxu0 %v16
  %140 = vmatprep.subr.mxu0 0.0
  %141 = vmatpush1.msra.mxu0 %v15
  %142 = vmatprep.subr.mxu0 0.0
  %143 = vmatpush1.msra.mxu0 %v14
  %144 = vmatprep.subr.mxu0 0.0
  %145 = vmatpush2.msra.mxu0 0.0
  %146 = vmatprep.subr.mxu0 0.0
  %147 = vmatpush2.msra.mxu0 0.0
  %148 = vmatprep.subr.mxu0 0.0
  %149 = vmatpush2.msra.mxu0 0.0
  %150 = vmatprep.subr.mxu0 0.0
  %151 = vmatpush2.msra.mxu0 0.0
  %152 = vmatprep.subr.mxu0 0.0
  %153 = vmatpush2.msra.mxu0 0.0
  %154 = vmatprep.subr.mxu0 0.0
  %155 = vmatpush2.msra.mxu0 0.0
  %156 = vmatprep.subr.mxu0 0.0
  %157 = vmatpush2.msra.mxu0 0.0
  %158 = vmatprep.subr.mxu0 0.0
  %159 = vmatpush2.msra.mxu0 0.0
  %160 = vmatprep.subr.mxu0 0.0
  %161 = vmatpush2.msra.mxu0 0.0
  %162 = vmatprep.subr.mxu0 0.0
  %163 = vmatpush2.msra.mxu0 0.0
  %164 = vmatprep.subr.mxu0 0.0
  %165 = vmatpush2.msra.mxu0 0.0
  %166 = vmatprep.subr.mxu0 0.0
  %167 = vmatpush2.msra.mxu0 0.0
  %168 = vmatprep.subr.mxu0 0.0
  %169 = vmatpush2.msra.mxu0 0.0
  %170 = vmatprep.subr.mxu0 0.0
  %171 = vmatpush2.msra.mxu0 0.0
  %172 = vmatprep.subr.mxu0 0.0
  %173 = vmatpush2.msra.mxu0 0.0
  %174 = vmatprep.subr.mxu0 0.0
  %175 = vmatpush2.msra.mxu0 0.0
  %176 = vmatprep.mubr.f32.mxu0 0.0
  %177 = vmatmul.mubr.f32.gmra.mxu0 %v110
  %v178 = vpop.f32.mrf.mxu0
  %v179 = vadd.f32 0.0, %v178
  %v180 = vpop.f32.mrf.mxu0
  %181 = vdwg.mxu0
  %v183 = vrot.slane %v179, 6
  %v185 = vadd.f32 %v97, %v183
  %v186 = vtanh.pop %v185
  %vm187 = vcmask 257026
  %188 = vst.msk [vmem:[#allocation2] sm:$0xc] %vm187, %v186
  %v190 = vrot.slane %v186, 2
  %v191 = vsel %vm108, %v190, 0
  %193 = vmatprep.subr.mxu0 0.0
  %194 = vmatpush1.msra.mxu0 0.0
  %195 = vmatprep.subr.mxu0 0.0
  %196 = vmatpush1.msra.mxu0 0.0
  %197 = vmatprep.subr.mxu0 0.0
  %198 = vmatpush1.msra.mxu0 0.0
  %199 = vmatprep.subr.mxu0 0.0
  %200 = vmatpush1.msra.mxu0 0.0
  %201 = vmatprep.subr.mxu0 0.0
  %202 = vmatpush1.msra.mxu0 0.0
  %203 = vmatprep.subr.mxu0 0.0
  %204 = vmatpush1.msra.mxu0 0.0
  %205 = vmatprep.subr.mxu0 0.0
  %206 = vmatpush1.msra.mxu0 0.0
  %207 = vmatprep.subr.mxu0 0.0
  %208 = vmatpush1.msra.mxu0 0.0
  %209 = vmatprep.subr.mxu0 0.0
  %210 = vmatpush1.msra.mxu0 0.0
  %211 = vmatprep.subr.mxu0 0.0
  %212 = vmatpush1.msra.mxu0 0.0
  %213 = vmatprep.subr.mxu0 0.0
  %214 = vmatpush1.msra.mxu0 0.0
  %215 = vmatprep.subr.mxu0 0.0
  %216 = vmatpush1.msra.mxu0 0.0
  %217 = vmatprep.subr.mxu0 0.0
  %218 = vmatpush1.msra.mxu0 %v17
  %219 = vmatprep.subr.mxu0 0.0
  %220 = vmatpush1.msra.mxu0 %v16
  %221 = vmatprep.subr.mxu0 0.0
  %222 = vmatpush1.msra.mxu0 %v15
  %223 = vmatprep.subr.mxu0 0.0
  %224 = vmatpush1.msra.mxu0 %v14
  %225 = vmatprep.subr.mxu0 0.0
  %226 = vmatpush2.msra.mxu0 0.0
  %227 = vmatprep.subr.mxu0 0.0
  %228 = vmatpush2.msra.mxu0 0.0
  %229 = vmatprep.subr.mxu0 0.0
  %230 = vmatpush2.msra.mxu0 0.0
  %231 = vmatprep.subr.mxu0 0.0
  %232 = vmatpush2.msra.mxu0 0.0
  %233 = vmatprep.subr.mxu0 0.0
  %234 = vmatpush2.msra.mxu0 0.0
  %235 = vmatprep.subr.mxu0 0.0
  %236 = vmatpush2.msra.mxu0 0.0
  %237 = vmatprep.subr.mxu0 0.0
  %238 = vmatpush2.msra.mxu0 0.0
  %239 = vmatprep.subr.mxu0 0.0
  %240 = vmatpush2.msra.mxu0 0.0
  %241 = vmatprep.subr.mxu0 0.0
  %242 = vmatpush2.msra.mxu0 0.0
  %243 = vmatprep.subr.mxu0 0.0
  %244 = vmatpush2.msra.mxu0 0.0
  %245 = vmatprep.subr.mxu0 0.0
  %246 = vmatpush2.msra.mxu0 0.0
  %247 = vmatprep.subr.mxu0 0.0
  %248 = vmatpush2.msra.mxu0 0.0
  %249 = vmatprep.subr.mxu0 0.0
  %250 = vmatpush2.msra.mxu0 0.0
  %251 = vmatprep.subr.mxu0 0.0
  %252 = vmatpush2.msra.mxu0 0.0
  %253 = vmatprep.subr.mxu0 0.0
  %254 = vmatpush2.msra.mxu0 0.0
  %255 = vmatprep.subr.mxu0 0.0
  %256 = vmatpush2.msra.mxu0 0.0
  %257 = vmatprep.mubr.f32.mxu0 0.0
  %258 = vmatmul.mubr.f32.gmra.mxu0 %v191
  %v259 = vpop.f32.mrf.mxu0
  %v260 = vadd.f32 0.0, %v259
  %v261 = vpop.f32.mrf.mxu0
  %262 = vdwg.mxu0
  %v264 = vrot.slane %v260, 4
  %v266 = vadd.f32 %v97, %v264
  %v267 = vtanh.pop %v266
  %vm268 = vcmask 259076
  %269 = vst.msk [vmem:[#allocation2] sm:$0x30] %vm268, %v267
  %v271 = vrot.slane %v267, 4
  %v272 = vsel %vm108, %v271, 0
  %274 = vmatprep.subr.mxu0 0.0
  %275 = vmatpush1.msra.mxu0 0.0
  %276 = vmatprep.subr.mxu0 0.0
  %277 = vmatpush1.msra.mxu0 0.0
  %278 = vmatprep.subr.mxu0 0.0
  %279 = vmatpush1.msra.mxu0 0.0
  %280 = vmatprep.subr.mxu0 0.0
  %281 = vmatpush1.msra.mxu0 0.0
  %282 = vmatprep.subr.mxu0 0.0
  %283 = vmatpush1.msra.mxu0 0.0
  %284 = vmatprep.subr.mxu0 0.0
  %285 = vmatpush1.msra.mxu0 0.0
  %286 = vmatprep.subr.mxu0 0.0
  %287 = vmatpush1.msra.mxu0 0.0
  %288 = vmatprep.subr.mxu0 0.0
  %289 = vmatpush1.msra.mxu0 0.0
  %290 = vmatprep.subr.mxu0 0.0
  %291 = vmatpush1.msra.mxu0 0.0
  %292 = vmatprep.subr.mxu0 0.0
  %293 = vmatpush1.msra.mxu0 0.0
  %294 = vmatprep.subr.mxu0 0.0
  %295 = vmatpush1.msra.mxu0 0.0
  %296 = vmatprep.subr.mxu0 0.0
  %297 = vmatpush1.msra.mxu0 0.0
  %298 = vmatprep.subr.mxu0 0.0
  %299 = vmatpush1.msra.mxu0 %v17
  %300 = vmatprep.subr.mxu0 0.0
  %301 = vmatpush1.msra.mxu0 %v16
  %302 = vmatprep.subr.mxu0 0.0
  %303 = vmatpush1.msra.mxu0 %v15
  %304 = vmatprep.subr.mxu0 0.0
  %305 = vmatpush1.msra.mxu0 %v14
  %306 = vmatprep.subr.mxu0 0.0
  %307 = vmatpush2.msra.mxu0 0.0
  %308 = vmatprep.subr.mxu0 0.0
  %309 = vmatpush2.msra.mxu0 0.0
  %310 = vmatprep.subr.mxu0 0.0
  %311 = vmatpush2.msra.mxu0 0.0
  %312 = vmatprep.subr.mxu0 0.0
  %313 = vmatpush2.msra.mxu0 0.0
  %314 = vmatprep.subr.mxu0 0.0
  %315 = vmatpush2.msra.mxu0 0.0
  %316 = vmatprep.subr.mxu0 0.0
  %317 = vmatpush2.msra.mxu0 0.0
  %318 = vmatprep.subr.mxu0 0.0
  %319 = vmatpush2.msra.mxu0 0.0
  %320 = vmatprep.subr.mxu0 0.0
  %321 = vmatpush2.msra.mxu0 0.0
  %322 = vmatprep.subr.mxu0 0.0
  %323 = vmatpush2.msra.mxu0 0.0
  %324 = vmatprep.subr.mxu0 0.0
  %325 = vmatpush2.msra.mxu0 0.0
  %326 = vmatprep.subr.mxu0 0.0
  %327 = vmatpush2.msra.mxu0 0.0
  %328 = vmatprep.subr.mxu0 0.0
  %329 = vmatpush2.msra.mxu0 0.0
  %330 = vmatprep.subr.mxu0 0.0
  %331 = vmatpush2.msra.mxu0 0.0
  %332 = vmatprep.subr.mxu0 0.0
  %333 = vmatpush2.msra.mxu0 0.0
  %334 = vmatprep.subr.mxu0 0.0
  %335 = vmatpush2.msra.mxu0 0.0
  %336 = vmatprep.subr.mxu0 0.0
  %337 = vmatpush2.msra.mxu0 0.0
  %338 = vmatprep.mubr.f32.mxu0 0.0
  %339 = vmatmul.mubr.f32.gmra.mxu0 %v272
  %v340 = vpop.f32.mrf.mxu0
  %v341 = vadd.f32 0.0, %v340
  %v342 = vpop.f32.mrf.mxu0
  %343 = vdwg.mxu0
  %v345 = vrot.slane %v341, 2
  %v347 = vadd.f32 %v97, %v345
  %v348 = vtanh.pop %v347
  %vm349 = vcmask 261126
  %350 = vst.msk [vmem:[#allocation2] sm:$0xc0] %vm349, %v348
  %v352 = vrot.slane %v348, 6
  %v353 = vsel %vm108, %v352, 0
  %355 = vmatprep.subr.mxu0 0.0
  %356 = vmatpush1.msra.mxu0 0.0
  %357 = vmatprep.subr.mxu0 0.0
  %358 = vmatpush1.msra.mxu0 0.0
  %359 = vmatprep.subr.mxu0 0.0
  %360 = vmatpush1.msra.mxu0 0.0
  %361 = vmatprep.subr.mxu0 0.0
  %362 = vmatpush1.msra.mxu0 0.0
  %363 = vmatprep.subr.mxu0 0.0
  %364 = vmatpush1.msra.mxu0 0.0
  %365 = vmatprep.subr.mxu0 0.0
  %366 = vmatpush1.msra.mxu0 0.0
  %367 = vmatprep.subr.mxu0 0.0
  %368 = vmatpush1.msra.mxu0 0.0
  %369 = vmatprep.subr.mxu0 0.0
  %370 = vmatpush1.msra.mxu0 0.0
  %371 = vmatprep.subr.mxu0 0.0
  %372 = vmatpush1.msra.mxu0 0.0
  %373 = vmatprep.subr.mxu0 0.0
  %374 = vmatpush1.msra.mxu0 0.0
  %375 = vmatprep.subr.mxu0 0.0
  %376 = vmatpush1.msra.mxu0 0.0
  %377 = vmatprep.subr.mxu0 0.0
  %378 = vmatpush1.msra.mxu0 0.0
  %379 = vmatprep.subr.mxu0 0.0
  %380 = vmatpush1.msra.mxu0 %v17
  %381 = vmatprep.subr.mxu0 0.0
  %382 = vmatpush1.msra.mxu0 %v16
  %383 = vmatprep.subr.mxu0 0.0
  %384 = vmatpush1.msra.mxu0 %v15
  %385 = vmatprep.subr.mxu0 0.0
  %386 = vmatpush1.msra.mxu0 %v14
  %387 = vmatprep.subr.mxu0 0.0
  %388 = vmatpush2.msra.mxu0 0.0
  %389 = vmatprep.subr.mxu0 0.0
  %390 = vmatpush2.msra.mxu0 0.0
  %391 = vmatprep.subr.mxu0 0.0
  %392 = vmatpush2.msra.mxu0 0.0
  %393 = vmatprep.subr.mxu0 0.0
  %394 = vmatpush2.msra.mxu0 0.0
  %395 = vmatprep.subr.mxu0 0.0
  %396 = vmatpush2.msra.mxu0 0.0
  %397 = vmatprep.subr.mxu0 0.0
  %398 = vmatpush2.msra.mxu0 0.0
  %399 = vmatprep.subr.mxu0 0.0
  %400 = vmatpush2.msra.mxu0 0.0
  %401 = vmatprep.subr.mxu0 0.0
  %402 = vmatpush2.msra.mxu0 0.0
  %403 = vmatprep.subr.mxu0 0.0
  %404 = vmatpush2.msra.mxu0 0.0
  %405 = vmatprep.subr.mxu0 0.0
  %406 = vmatpush2.msra.mxu0 0.0
  %407 = vmatprep.subr.mxu0 0.0
  %408 = vmatpush2.msra.mxu0 0.0
  %409 = vmatprep.subr.mxu0 0.0
  %410 = vmatpush2.msra.mxu0 0.0
  %411 = vmatprep.subr.mxu0 0.0
  %412 = vmatpush2.msra.mxu0 0.0
  %413 = vmatprep.subr.mxu0 0.0
  %414 = vmatpush2.msra.mxu0 0.0
  %415 = vmatprep.subr.mxu0 0.0
  %416 = vmatpush2.msra.mxu0 0.0
  %417 = vmatprep.subr.mxu0 0.0
  %418 = vmatpush2.msra.mxu0 0.0
  %419 = vmatprep.mubr.f32.mxu0 0.0
  %420 = vmatmul.mubr.f32.gmra.mxu0 %v353
  %v421 = vpop.f32.mrf.mxu0
  %v422 = vadd.f32 0.0, %v421
  %v423 = vpop.f32.mrf.mxu0
  %424 = vdwg.mxu0
  %v425 = vadd.f32 %v102, %v422
  %v426 = vtanh.pop %v425
  %427 = vst.msk [vmem:[#allocation2 + $0x8] sm:$0x3] %vm106, %v426
  %v429 = vsel %vm108, %v426, 0
  %431 = vmatprep.subr.mxu0 0.0
  %432 = vmatpush1.msra.mxu0 0.0
  %433 = vmatprep.subr.mxu0 0.0
  %434 = vmatpush1.msra.mxu0 0.0
  %435 = vmatprep.subr.mxu0 0.0
  %436 = vmatpush1.msra.mxu0 0.0
  %437 = vmatprep.subr.mxu0 0.0
  %438 = vmatpush1.msra.mxu0 0.0
  %439 = vmatprep.subr.mxu0 0.0
  %440 = vmatpush1.msra.mxu0 0.0
  %441 = vmatprep.subr.mxu0 0.0
  %442 = vmatpush1.msra.mxu0 0.0
  %443 = vmatprep.subr.mxu0 0.0
  %444 = vmatpush1.msra.mxu0 0.0
  %445 = vmatprep.subr.mxu0 0.0
  %446 = vmatpush1.msra.mxu0 0.0
  %447 = vmatprep.subr.mxu0 0.0
  %448 = vmatpush1.msra.mxu0 0.0
  %449 = vmatprep.subr.mxu0 0.0
  %450 = vmatpush1.msra.mxu0 0.0
  %451 = vmatprep.subr.mxu0 0.0
  %452 = vmatpush1.msra.mxu0 0.0
  %453 = vmatprep.subr.mxu0 0.0
  %454 = vmatpush1.msra.mxu0 0.0
  %455 = vmatprep.subr.mxu0 0.0
  %456 = vmatpush1.msra.mxu0 %v17
  %457 = vmatprep.subr.mxu0 0.0
  %458 = vmatpush1.msra.mxu0 %v16
  %459 = vmatprep.subr.mxu0 0.0
  %460 = vmatpush1.msra.mxu0 %v15
  %461 = vmatprep.subr.mxu0 0.0
  %462 = vmatpush1.msra.mxu0 %v14
  %463 = vmatprep.subr.mxu0 0.0
  %464 = vmatpush2.msra.mxu0 0.0
  %465 = vmatprep.subr.mxu0 0.0
  %466 = vmatpush2.msra.mxu0 0.0
  %467 = vmatprep.subr.mxu0 0.0
  %468 = vmatpush2.msra.mxu0 0.0
  %469 = vmatprep.subr.mxu0 0.0
  %470 = vmatpush2.msra.mxu0 0.0
  %471 = vmatprep.subr.mxu0 0.0
  %472 = vmatpush2.msra.mxu0 0.0
  %473 = vmatprep.subr.mxu0 0.0
  %474 = vmatpush2.msra.mxu0 0.0
  %475 = vmatprep.subr.mxu0 0.0
  %476 = vmatpush2.msra.mxu0 0.0
  %477 = vmatprep.subr.mxu0 0.0
  %478 = vmatpush2.msra.mxu0 0.0
  %479 = vmatprep.subr.mxu0 0.0
  %480 = vmatpush2.msra.mxu0 0.0
  %481 = vmatprep.subr.mxu0 0.0
  %482 = vmatpush2.msra.mxu0 0.0
  %483 = vmatprep.subr.mxu0 0.0
  %484 = vmatpush2.msra.mxu0 0.0
  %485 = vmatprep.subr.mxu0 0.0
  %486 = vmatpush2.msra.mxu0 0.0
  %487 = vmatprep.subr.mxu0 0.0
  %488 = vmatpush2.msra.mxu0 0.0
  %489 = vmatprep.subr.mxu0 0.0
  %490 = vmatpush2.msra.mxu0 0.0
  %491 = vmatprep.subr.mxu0 0.0
  %492 = vmatpush2.msra.mxu0 0.0
  %493 = vmatprep.subr.mxu0 0.0
  %494 = vmatpush2.msra.mxu0 0.0
  %495 = vmatprep.mubr.f32.mxu0 0.0
  %496 = vmatmul.mubr.f32.gmra.mxu0 %v429
  %v497 = vpop.f32.mrf.mxu0
  %v498 = vadd.f32 0.0, %v497
  %v499 = vpop.f32.mrf.mxu0
  %500 = vdwg.mxu0
  %v502 = vrot.slane %v498, 6
  %v504 = vadd.f32 %v102, %v502
  %v505 = vtanh.pop %v504
  %506 = vst.msk [vmem:[#allocation2 + $0x8] sm:$0xc] %vm187, %v505
  %v508 = vrot.slane %v505, 2
  %v509 = vsel %vm108, %v508, 0
  %511 = vmatprep.subr.mxu0 0.0
  %512 = vmatpush1.msra.mxu0 0.0
  %513 = vmatprep.subr.mxu0 0.0
  %514 = vmatpush1.msra.mxu0 0.0
  %515 = vmatprep.subr.mxu0 0.0
  %516 = vmatpush1.msra.mxu0 0.0
  %517 = vmatprep.subr.mxu0 0.0
  %518 = vmatpush1.msra.mxu0 0.0
  %519 = vmatprep.subr.mxu0 0.0
  %520 = vmatpush1.msra.mxu0 0.0
  %521 = vmatprep.subr.mxu0 0.0
  %522 = vmatpush1.msra.mxu0 0.0
  %523 = vmatprep.subr.mxu0 0.0
  %524 = vmatpush1.msra.mxu0 0.0
  %525 = vmatprep.subr.mxu0 0.0
  %526 = vmatpush1.msra.mxu0 0.0
  %527 = vmatprep.subr.mxu0 0.0
  %528 = vmatpush1.msra.mxu0 0.0
  %529 = vmatprep.subr.mxu0 0.0
  %530 = vmatpush1.msra.mxu0 0.0
  %531 = vmatprep.subr.mxu0 0.0
  %532 = vmatpush1.msra.mxu0 0.0
  %533 = vmatprep.subr.mxu0 0.0
  %534 = vmatpush1.msra.mxu0 0.0
  %535 = vmatprep.subr.mxu0 0.0
  %536 = vmatpush1.msra.mxu0 %v17
  %537 = vmatprep.subr.mxu0 0.0
  %538 = vmatpush1.msra.mxu0 %v16
  %539 = vmatprep.subr.mxu0 0.0
  %540 = vmatpush1.msra.mxu0 %v15
  %541 = vmatprep.subr.mxu0 0.0
  %542 = vmatpush1.msra.mxu0 %v14
  %543 = vmatprep.subr.mxu0 0.0
  %544 = vmatpush2.msra.mxu0 0.0
  %545 = vmatprep.subr.mxu0 0.0
  %546 = vmatpush2.msra.mxu0 0.0
  %547 = vmatprep.subr.mxu0 0.0
  %548 = vmatpush2.msra.mxu0 0.0
  %549 = vmatprep.subr.mxu0 0.0
  %550 = vmatpush2.msra.mxu0 0.0
  %551 = vmatprep.subr.mxu0 0.0
  %552 = vmatpush2.msra.mxu0 0.0
  %553 = vmatprep.subr.mxu0 0.0
  %554 = vmatpush2.msra.mxu0 0.0
  %555 = vmatprep.subr.mxu0 0.0
  %556 = vmatpush2.msra.mxu0 0.0
  %557 = vmatprep.subr.mxu0 0.0
  %558 = vmatpush2.msra.mxu0 0.0
  %559 = vmatprep.subr.mxu0 0.0
  %560 = vmatpush2.msra.mxu0 0.0
  %561 = vmatprep.subr.mxu0 0.0
  %562 = vmatpush2.msra.mxu0 0.0
  %563 = vmatprep.subr.mxu0 0.0
  %564 = vmatpush2.msra.mxu0 0.0
  %565 = vmatprep.subr.mxu0 0.0
  %566 = vmatpush2.msra.mxu0 0.0
  %567 = vmatprep.subr.mxu0 0.0
  %568 = vmatpush2.msra.mxu0 0.0
  %569 = vmatprep.subr.mxu0 0.0
  %570 = vmatpush2.msra.mxu0 0.0
  %571 = vmatprep.subr.mxu0 0.0
  %572 = vmatpush2.msra.mxu0 0.0
  %573 = vmatprep.subr.mxu0 0.0
  %574 = vmatpush2.msra.mxu0 0.0
  %575 = vmatprep.mubr.f32.mxu0 0.0
  %576 = vmatmul.mubr.f32.gmra.mxu0 %v509
  %v577 = vpop.f32.mrf.mxu0
  %v578 = vadd.f32 0.0, %v577
  %v579 = vpop.f32.mrf.mxu0
  %580 = vdwg.mxu0
  %v582 = vrot.slane %v578, 4
  %v584 = vadd.f32 %v102, %v582
  %v585 = vtanh.pop %v584
  %586 = vst.msk [vmem:[#allocation2 + $0x8] sm:$0x30] %vm268, %v585
  %v588 = vrot.slane %v585, 4
  %v589 = vsel %vm108, %v588, 0
  %591 = vmatprep.subr.mxu0 0.0
  %592 = vmatpush1.msra.mxu0 0.0
  %593 = vmatprep.subr.mxu0 0.0
  %594 = vmatpush1.msra.mxu0 0.0
  %595 = vmatprep.subr.mxu0 0.0
  %596 = vmatpush1.msra.mxu0 0.0
  %597 = vmatprep.subr.mxu0 0.0
  %598 = vmatpush1.msra.mxu0 0.0
  %599 = vmatprep.subr.mxu0 0.0
  %600 = vmatpush1.msra.mxu0 0.0
  %601 = vmatprep.subr.mxu0 0.0
  %602 = vmatpush1.msra.mxu0 0.0
  %603 = vmatprep.subr.mxu0 0.0
  %604 = vmatpush1.msra.mxu0 0.0
  %605 = vmatprep.subr.mxu0 0.0
  %606 = vmatpush1.msra.mxu0 0.0
  %607 = vmatprep.subr.mxu0 0.0
  %608 = vmatpush1.msra.mxu0 0.0
  %609 = vmatprep.subr.mxu0 0.0
  %610 = vmatpush1.msra.mxu0 0.0
  %611 = vmatprep.subr.mxu0 0.0
  %612 = vmatpush1.msra.mxu0 0.0
  %613 = vmatprep.subr.mxu0 0.0
  %614 = vmatpush1.msra.mxu0 0.0
  %615 = vmatprep.subr.mxu0 0.0
  %616 = vmatpush1.msra.mxu0 %v17
  %617 = vmatprep.subr.mxu0 0.0
  %618 = vmatpush1.msra.mxu0 %v16
  %619 = vmatprep.subr.mxu0 0.0
  %620 = vmatpush1.msra.mxu0 %v15
  %621 = vmatprep.subr.mxu0 0.0
  %622 = vmatpush1.msra.mxu0 %v14
  %623 = vmatprep.subr.mxu0 0.0
  %624 = vmatpush2.msra.mxu0 0.0
  %625 = vmatprep.subr.mxu0 0.0
  %626 = vmatpush2.msra.mxu0 0.0
  %627 = vmatprep.subr.mxu0 0.0
  %628 = vmatpush2.msra.mxu0 0.0
  %629 = vmatprep.subr.mxu0 0.0
  %630 = vmatpush2.msra.mxu0 0.0
  %631 = vmatprep.subr.mxu0 0.0
  %632 = vmatpush2.msra.mxu0 0.0
  %633 = vmatprep.subr.mxu0 0.0
  %634 = vmatpush2.msra.mxu0 0.0
  %635 = vmatprep.subr.mxu0 0.0
  %636 = vmatpush2.msra.mxu0 0.0
  %637 = vmatprep.subr.mxu0 0.0
  %638 = vmatpush2.msra.mxu0 0.0
  %639 = vmatprep.subr.mxu0 0.0
  %640 = vmatpush2.msra.mxu0 0.0
  %641 = vmatprep.subr.mxu0 0.0
  %642 = vmatpush2.msra.mxu0 0.0
  %643 = vmatprep.subr.mxu0 0.0
  %644 = vmatpush2.msra.mxu0 0.0
  %645 = vmatprep.subr.mxu0 0.0
  %646 = vmatpush2.msra.mxu0 0.0
  %647 = vmatprep.subr.mxu0 0.0
  %648 = vmatpush2.msra.mxu0 0.0
  %649 = vmatprep.subr.mxu0 0.0
  %650 = vmatpush2.msra.mxu0 0.0
  %651 = vmatprep.subr.mxu0 0.0
  %652 = vmatpush2.msra.mxu0 0.0
  %653 = vmatprep.subr.mxu0 0.0
  %654 = vmatpush2.msra.mxu0 0.0
  %655 = vmatprep.mubr.f32.mxu0 0.0
  %656 = vmatmul.mubr.f32.gmra.mxu0 %v589
  %v657 = vpop.f32.mrf.mxu0
  %v658 = vadd.f32 0.0, %v657
  %v659 = vpop.f32.mrf.mxu0
  %660 = vdwg.mxu0
  %v662 = vrot.slane %v658, 2
  %v664 = vadd.f32 %v102, %v662
  %v665 = vtanh.pop %v664
  %666 = vst.msk [vmem:[#allocation2 + $0x8] sm:$0xc0] %vm349, %v665
  %v667 = vld [vmem:[#allocation2] sm:$0xff]
  %v668 = vld [vmem:[#allocation2 + $0x8] sm:$0xff]
  %v669 = vld [vmem:[%s1 + $0x30] sm:$0xff]
  %v670 = vld [vmem:[%s1 + $0x38] sm:$0xff]
  %v671 = vld [vmem:[%s1 + $0x40] sm:$0xff]
  %v672 = vld [vmem:[%s1 + $0x48] sm:$0xff]
  %v673 = vld [vmem:[%s1 + $0x50] sm:$0xff]
  %v674 = vld [vmem:[%s1 + $0x58] sm:$0xff]
  %v675 = vld [vmem:[%s1 + $0x60] sm:$0xff]
  %v676 = vld [vmem:[%s1 + $0x68] sm:$0xff]
  %v677 = vld [vmem:[%s1 + $0x70] sm:$0x1]
  %v678 = vlaneseq
  %v679 = vshrl.u32 %v678, 7
  %v680 = vsub.s32 0, %v679
  %v681 = vrot.slane %v677, %v680
  %v683 = vsel %vm108, %v667, 0
  %v686 = vsel %vm108, %v668, 0
  %688 = vmatprep.subr.mxu0 0.0
  %689 = vmatpush1.msra.mxu0 0.0
  %690 = vmatprep.subr.mxu0 0.0
  %691 = vmatpush1.msra.mxu0 0.0
  %692 = vmatprep.subr.mxu0 0.0
  %693 = vmatpush1.msra.mxu0 0.0
  %694 = vmatprep.subr.mxu0 0.0
  %695 = vmatpush1.msra.mxu0 0.0
  %696 = vmatprep.subr.mxu0 0.0
  %697 = vmatpush1.msra.mxu0 0.0
  %698 = vmatprep.subr.mxu0 0.0
  %699 = vmatpush1.msra.mxu0 0.0
  %700 = vmatprep.subr.mxu0 0.0
  %701 = vmatpush1.msra.mxu0 0.0
  %702 = vmatprep.subr.mxu0 0.0
  %703 = vmatpush1.msra.mxu0 0.0
  %704 = vmatprep.subr.mxu0 0.0
  %705 = vmatpush1.msra.mxu0 0.0
  %706 = vmatprep.subr.mxu0 0.0
  %707 = vmatpush1.msra.mxu0 0.0
  %708 = vmatprep.subr.mxu0 0.0
  %709 = vmatpush1.msra.mxu0 0.0
  %710 = vmatprep.subr.mxu0 0.0
  %711 = vmatpush1.msra.mxu0 0.0
  %712 = vmatprep.subr.mxu0 0.0
  %713 = vmatpush1.msra.mxu0 %v672
  %714 = vmatprep.subr.mxu0 0.0
  %715 = vmatpush1.msra.mxu0 %v671
  %716 = vmatprep.subr.mxu0 0.0
  %717 = vmatpush1.msra.mxu0 %v670
  %718 = vmatprep.subr.mxu0 0.0
  %719 = vmatpush1.msra.mxu0 %v669
  %720 = vmatprep.subr.mxu0 0.0
  %721 = vmatpush2.msra.mxu0 0.0
  %722 = vmatprep.subr.mxu0 0.0
  %723 = vmatpush2.msra.mxu0 0.0
  %724 = vmatprep.subr.mxu0 0.0
  %725 = vmatpush2.msra.mxu0 0.0
  %726 = vmatprep.subr.mxu0 0.0
  %727 = vmatpush2.msra.mxu0 0.0
  %728 = vmatprep.subr.mxu0 0.0
  %729 = vmatpush2.msra.mxu0 0.0
  %730 = vmatprep.subr.mxu0 0.0
  %731 = vmatpush2.msra.mxu0 0.0
  %732 = vmatprep.subr.mxu0 0.0
  %733 = vmatpush2.msra.mxu0 0.0
  %734 = vmatprep.subr.mxu0 0.0
  %735 = vmatpush2.msra.mxu0 0.0
  %736 = vmatprep.subr.mxu0 0.0
  %737 = vmatpush2.msra.mxu0 0.0
  %738 = vmatprep.subr.mxu0 0.0
  %739 = vmatpush2.msra.mxu0 0.0
  %740 = vmatprep.subr.mxu0 0.0
  %741 = vmatpush2.msra.mxu0 0.0
  %742 = vmatprep.subr.mxu0 0.0
  %743 = vmatpush2.msra.mxu0 0.0
  %744 = vmatprep.subr.mxu0 0.0
  %745 = vmatpush2.msra.mxu0 0.0
  %746 = vmatprep.subr.mxu0 0.0
  %747 = vmatpush2.msra.mxu0 0.0
  %748 = vmatprep.subr.mxu0 0.0
  %749 = vmatpush2.msra.mxu0 0.0
  %750 = vmatprep.subr.mxu0 0.0
  %751 = vmatpush2.msra.mxu0 0.0
  %752 = vmatprep.mubr.f32.mxu0 0.0
  %753 = vmatmul.mubr.f32.gmra.mxu0 %v683
  %v754 = vpop.f32.mrf.mxu0
  %v755 = vadd.f32 %v681, %v754
  %v756 = vpop.f32.mrf.mxu0
  %757 = vmatprep.mubr.f32.mxu0 0.0
  %758 = vmatmul.mubr.f32.gmra.mxu0 %v686
  %v759 = vpop.f32.mrf.mxu0
  %v760 = vadd.f32 %v681, %v759
  %v761 = vpop.f32.mrf.mxu0
  %762 = vdwg.mxu0
  %v763 = vtanh.pop %v755
  %v765 = vsel %vm108, %v763, 0
  %767 = vmatprep.subr.mxu0 0.0
  %768 = vmatpush1.msra.mxu0 0.0
  %769 = vmatprep.subr.mxu0 0.0
  %770 = vmatpush1.msra.mxu0 0.0
  %771 = vmatprep.subr.mxu0 0.0
  %772 = vmatpush1.msra.mxu0 0.0
  %773 = vmatprep.subr.mxu0 0.0
  %774 = vmatpush1.msra.mxu0 0.0
  %775 = vmatprep.subr.mxu0 0.0
  %776 = vmatpush1.msra.mxu0 0.0
  %777 = vmatprep.subr.mxu0 0.0
  %778 = vmatpush1.msra.mxu0 0.0
  %779 = vmatprep.subr.mxu0 0.0
  %780 = vmatpush1.msra.mxu0 0.0
  %781 = vmatprep.subr.mxu0 0.0
  %782 = vmatpush1.msra.mxu0 0.0
  %783 = vmatprep.subr.mxu0 0.0
  %784 = vmatpush1.msra.mxu0 0.0
  %785 = vmatprep.subr.mxu0 0.0
  %786 = vmatpush1.msra.mxu0 0.0
  %787 = vmatprep.subr.mxu0 0.0
  %788 = vmatpush1.msra.mxu0 0.0
  %789 = vmatprep.subr.mxu0 0.0
  %790 = vmatpush1.msra.mxu0 0.0
  %791 = vmatprep.subr.mxu0 0.0
  %792 = vmatpush1.msra.mxu0 %v676
  %793 = vmatprep.subr.mxu0 0.0
  %794 = vmatpush1.msra.mxu0 %v675
  %795 = vmatprep.subr.mxu0 0.0
  %796 = vmatpush1.msra.mxu0 %v674
  %797 = vmatprep.subr.mxu0 0.0
  %798 = vmatpush1.msra.mxu0 %v673
  %799 = vmatprep.subr.mxu0 0.0
  %800 = vmatpush2.msra.mxu0 0.0
  %801 = vmatprep.subr.mxu0 0.0
  %802 = vmatpush2.msra.mxu0 0.0
  %803 = vmatprep.subr.mxu0 0.0
  %804 = vmatpush2.msra.mxu0 0.0
  %805 = vmatprep.subr.mxu0 0.0
  %806 = vmatpush2.msra.mxu0 0.0
  %807 = vmatprep.subr.mxu0 0.0
  %808 = vmatpush2.msra.mxu0 0.0
  %809 = vmatprep.subr.mxu0 0.0
  %810 = vmatpush2.msra.mxu0 0.0
  %811 = vmatprep.subr.mxu0 0.0
  %812 = vmatpush2.msra.mxu0 0.0
  %813 = vmatprep.subr.mxu0 0.0
  %814 = vmatpush2.msra.mxu0 0.0
  %815 = vmatprep.subr.mxu0 0.0
  %816 = vmatpush2.msra.mxu0 0.0
  %817 = vmatprep.subr.mxu0 0.0
  %818 = vmatpush2.msra.mxu0 0.0
  %819 = vmatprep.subr.mxu0 0.0
  %820 = vmatpush2.msra.mxu0 0.0
  %821 = vmatprep.subr.mxu0 0.0
  %822 = vmatpush2.msra.mxu0 0.0
  %823 = vmatprep.subr.mxu0 0.0
  %824 = vmatpush2.msra.mxu0 0.0
  %825 = vmatprep.subr.mxu0 0.0
  %826 = vmatpush2.msra.mxu0 0.0
  %827 = vmatprep.subr.mxu0 0.0
  %828 = vmatpush2.msra.mxu0 0.0
  %829 = vmatprep.subr.mxu0 0.0
  %830 = vmatpush2.msra.mxu0 0.0
  %831 = vmatprep.mubr.f32.mxu0 0.0
  %832 = vmatmul.mubr.f32.gmra.mxu0 %v765
  %v833 = vpop.f32.mrf.mxu0
  %v834 = vadd.f32 0.0, %v833
  %v835 = vpop.f32.mrf.mxu0
  %836 = vdwg.mxu0
  %v838 = vrot.slane %v834, 6
  %v840 = vadd.f32 %v755, %v838
  %v841 = vtanh.pop %v840
  %v843 = vrot.slane %v841, 2
  %v844 = vsel %vm108, %v843, 0
  %846 = vmatprep.subr.mxu0 0.0
  %847 = vmatpush1.msra.mxu0 0.0
  %848 = vmatprep.subr.mxu0 0.0
  %849 = vmatpush1.msra.mxu0 0.0
  %850 = vmatprep.subr.mxu0 0.0
  %851 = vmatpush1.msra.mxu0 0.0
  %852 = vmatprep.subr.mxu0 0.0
  %853 = vmatpush1.msra.mxu0 0.0
  %854 = vmatprep.subr.mxu0 0.0
  %855 = vmatpush1.msra.mxu0 0.0
  %856 = vmatprep.subr.mxu0 0.0
  %857 = vmatpush1.msra.mxu0 0.0
  %858 = vmatprep.subr.mxu0 0.0
  %859 = vmatpush1.msra.mxu0 0.0
  %860 = vmatprep.subr.mxu0 0.0
  %861 = vmatpush1.msra.mxu0 0.0
  %862 = vmatprep.subr.mxu0 0.0
  %863 = vmatpush1.msra.mxu0 0.0
  %864 = vmatprep.subr.mxu0 0.0
  %865 = vmatpush1.msra.mxu0 0.0
  %866 = vmatprep.subr.mxu0 0.0
  %867 = vmatpush1.msra.mxu0 0.0
  %868 = vmatprep.subr.mxu0 0.0
  %869 = vmatpush1.msra.mxu0 0.0
  %870 = vmatprep.subr.mxu0 0.0
  %871 = vmatpush1.msra.mxu0 %v676
  %872 = vmatprep.subr.mxu0 0.0
  %873 = vmatpush1.msra.mxu0 %v675
  %874 = vmatprep.subr.mxu0 0.0
  %875 = vmatpush1.msra.mxu0 %v674
  %876 = vmatprep.subr.mxu0 0.0
  %877 = vmatpush1.msra.mxu0 %v673
  %878 = vmatprep.subr.mxu0 0.0
  %879 = vmatpush2.msra.mxu0 0.0
  %880 = vmatprep.subr.mxu0 0.0
  %881 = vmatpush2.msra.mxu0 0.0
  %882 = vmatprep.subr.mxu0 0.0
  %883 = vmatpush2.msra.mxu0 0.0
  %884 = vmatprep.subr.mxu0 0.0
  %885 = vmatpush2.msra.mxu0 0.0
  %886 = vmatprep.subr.mxu0 0.0
  %887 = vmatpush2.msra.mxu0 0.0
  %888 = vmatprep.subr.mxu0 0.0
  %889 = vmatpush2.msra.mxu0 0.0
  %890 = vmatprep.subr.mxu0 0.0
  %891 = vmatpush2.msra.mxu0 0.0
  %892 = vmatprep.subr.mxu0 0.0
  %893 = vmatpush2.msra.mxu0 0.0
  %894 = vmatprep.subr.mxu0 0.0
  %895 = vmatpush2.msra.mxu0 0.0
  %896 = vmatprep.subr.mxu0 0.0
  %897 = vmatpush2.msra.mxu0 0.0
  %898 = vmatprep.subr.mxu0 0.0
  %899 = vmatpush2.msra.mxu0 0.0
  %900 = vmatprep.subr.mxu0 0.0
  %901 = vmatpush2.msra.mxu0 0.0
  %902 = vmatprep.subr.mxu0 0.0
  %903 = vmatpush2.msra.mxu0 0.0
  %904 = vmatprep.subr.mxu0 0.0
  %905 = vmatpush2.msra.mxu0 0.0
  %906 = vmatprep.subr.mxu0 0.0
  %907 = vmatpush2.msra.mxu0 0.0
  %908 = vmatprep.subr.mxu0 0.0
  %909 = vmatpush2.msra.mxu0 0.0
  %910 = vmatprep.mubr.f32.mxu0 0.0
  %911 = vmatmul.mubr.f32.gmra.mxu0 %v844
  %v912 = vpop.f32.mrf.mxu0
  %v913 = vadd.f32 0.0, %v912
  %v914 = vpop.f32.mrf.mxu0
  %915 = vdwg.mxu0
  %v917 = vrot.slane %v913, 4
  %v919 = vadd.f32 %v755, %v917
  %v920 = vtanh.pop %v919
  %v922 = vrot.slane %v920, 4
  %v923 = vsel %vm108, %v922, 0
  %925 = vmatprep.subr.mxu0 0.0
  %926 = vmatpush1.msra.mxu0 0.0
  %927 = vmatprep.subr.mxu0 0.0
  %928 = vmatpush1.msra.mxu0 0.0
  %929 = vmatprep.subr.mxu0 0.0
  %930 = vmatpush1.msra.mxu0 0.0
  %931 = vmatprep.subr.mxu0 0.0
  %932 = vmatpush1.msra.mxu0 0.0
  %933 = vmatprep.subr.mxu0 0.0
  %934 = vmatpush1.msra.mxu0 0.0
  %935 = vmatprep.subr.mxu0 0.0
  %936 = vmatpush1.msra.mxu0 0.0
  %937 = vmatprep.subr.mxu0 0.0
  %938 = vmatpush1.msra.mxu0 0.0
  %939 = vmatprep.subr.mxu0 0.0
  %940 = vmatpush1.msra.mxu0 0.0
  %941 = vmatprep.subr.mxu0 0.0
  %942 = vmatpush1.msra.mxu0 0.0
  %943 = vmatprep.subr.mxu0 0.0
  %944 = vmatpush1.msra.mxu0 0.0
  %945 = vmatprep.subr.mxu0 0.0
  %946 = vmatpush1.msra.mxu0 0.0
  %947 = vmatprep.subr.mxu0 0.0
  %948 = vmatpush1.msra.mxu0 0.0
  %949 = vmatprep.subr.mxu0 0.0
  %950 = vmatpush1.msra.mxu0 %v676
  %951 = vmatprep.subr.mxu0 0.0
  %952 = vmatpush1.msra.mxu0 %v675
  %953 = vmatprep.subr.mxu0 0.0
  %954 = vmatpush1.msra.mxu0 %v674
  %955 = vmatprep.subr.mxu0 0.0
  %956 = vmatpush1.msra.mxu0 %v673
  %957 = vmatprep.subr.mxu0 0.0
  %958 = vmatpush2.msra.mxu0 0.0
  %959 = vmatprep.subr.mxu0 0.0
  %960 = vmatpush2.msra.mxu0 0.0
  %961 = vmatprep.subr.mxu0 0.0
  %962 = vmatpush2.msra.mxu0 0.0
  %963 = vmatprep.subr.mxu0 0.0
  %964 = vmatpush2.msra.mxu0 0.0
  %965 = vmatprep.subr.mxu0 0.0
  %966 = vmatpush2.msra.mxu0 0.0
  %967 = vmatprep.subr.mxu0 0.0
  %968 = vmatpush2.msra.mxu0 0.0
  %969 = vmatprep.subr.mxu0 0.0
  %970 = vmatpush2.msra.mxu0 0.0
  %971 = vmatprep.subr.mxu0 0.0
  %972 = vmatpush2.msra.mxu0 0.0
  %973 = vmatprep.subr.mxu0 0.0
  %974 = vmatpush2.msra.mxu0 0.0
  %975 = vmatprep.subr.mxu0 0.0
  %976 = vmatpush2.msra.mxu0 0.0
  %977 = vmatprep.subr.mxu0 0.0
  %978 = vmatpush2.msra.mxu0 0.0
  %979 = vmatprep.subr.mxu0 0.0
  %980 = vmatpush2.msra.mxu0 0.0
  %981 = vmatprep.subr.mxu0 0.0
  %982 = vmatpush2.msra.mxu0 0.0
  %983 = vmatprep.subr.mxu0 0.0
  %984 = vmatpush2.msra.mxu0 0.0
  %985 = vmatprep.subr.mxu0 0.0
  %986 = vmatpush2.msra.mxu0 0.0
  %987 = vmatprep.subr.mxu0 0.0
  %988 = vmatpush2.msra.mxu0 0.0
  %989 = vmatprep.mubr.f32.mxu0 0.0
  %990 = vmatmul.mubr.f32.gmra.mxu0 %v923
  %v991 = vpop.f32.mrf.mxu0
  %v992 = vadd.f32 0.0, %v991
  %v993 = vpop.f32.mrf.mxu0
  %994 = vdwg.mxu0
  %v996 = vrot.slane %v992, 2
  %v998 = vadd.f32 %v755, %v996
  %v999 = vtanh.pop %v998
  %v1001 = vrot.slane %v999, 6
  %v1002 = vsel %vm108, %v1001, 0
  %1004 = vmatprep.subr.mxu0 0.0
  %1005 = vmatpush1.msra.mxu0 0.0
  %1006 = vmatprep.subr.mxu0 0.0
  %1007 = vmatpush1.msra.mxu0 0.0
  %1008 = vmatprep.subr.mxu0 0.0
  %1009 = vmatpush1.msra.mxu0 0.0
  %1010 = vmatprep.subr.mxu0 0.0
  %1011 = vmatpush1.msra.mxu0 0.0
  %1012 = vmatprep.subr.mxu0 0.0
  %1013 = vmatpush1.msra.mxu0 0.0
  %1014 = vmatprep.subr.mxu0 0.0
  %1015 = vmatpush1.msra.mxu0 0.0
  %1016 = vmatprep.subr.mxu0 0.0
  %1017 = vmatpush1.msra.mxu0 0.0
  %1018 = vmatprep.subr.mxu0 0.0
  %1019 = vmatpush1.msra.mxu0 0.0
  %1020 = vmatprep.subr.mxu0 0.0
  %1021 = vmatpush1.msra.mxu0 0.0
  %1022 = vmatprep.subr.mxu0 0.0
  %1023 = vmatpush1.msra.mxu0 0.0
  %1024 = vmatprep.subr.mxu0 0.0
  %1025 = vmatpush1.msra.mxu0 0.0
  %1026 = vmatprep.subr.mxu0 0.0
  %1027 = vmatpush1.msra.mxu0 0.0
  %1028 = vmatprep.subr.mxu0 0.0
  %1029 = vmatpush1.msra.mxu0 %v676
  %1030 = vmatprep.subr.mxu0 0.0
  %1031 = vmatpush1.msra.mxu0 %v675
  %1032 = vmatprep.subr.mxu0 0.0
  %1033 = vmatpush1.msra.mxu0 %v674
  %1034 = vmatprep.subr.mxu0 0.0
  %1035 = vmatpush1.msra.mxu0 %v673
  %1036 = vmatprep.subr.mxu0 0.0
  %1037 = vmatpush2.msra.mxu0 0.0
  %1038 = vmatprep.subr.mxu0 0.0
  %1039 = vmatpush2.msra.mxu0 0.0
  %1040 = vmatprep.subr.mxu0 0.0
  %1041 = vmatpush2.msra.mxu0 0.0
  %1042 = vmatprep.subr.mxu0 0.0
  %1043 = vmatpush2.msra.mxu0 0.0
  %1044 = vmatprep.subr.mxu0 0.0
  %1045 = vmatpush2.msra.mxu0 0.0
  %1046 = vmatprep.subr.mxu0 0.0
  %1047 = vmatpush2.msra.mxu0 0.0
  %1048 = vmatprep.subr.mxu0 0.0
  %1049 = vmatpush2.msra.mxu0 0.0
  %1050 = vmatprep.subr.mxu0 0.0
  %1051 = vmatpush2.msra.mxu0 0.0
  %1052 = vmatprep.subr.mxu0 0.0
  %1053 = vmatpush2.msra.mxu0 0.0
  %1054 = vmatprep.subr.mxu0 0.0
  %1055 = vmatpush2.msra.mxu0 0.0
  %1056 = vmatprep.subr.mxu0 0.0
  %1057 = vmatpush2.msra.mxu0 0.0
  %1058 = vmatprep.subr.mxu0 0.0
  %1059 = vmatpush2.msra.mxu0 0.0
  %1060 = vmatprep.subr.mxu0 0.0
  %1061 = vmatpush2.msra.mxu0 0.0
  %1062 = vmatprep.subr.mxu0 0.0
  %1063 = vmatpush2.msra.mxu0 0.0
  %1064 = vmatprep.subr.mxu0 0.0
  %1065 = vmatpush2.msra.mxu0 0.0
  %1066 = vmatprep.subr.mxu0 0.0
  %1067 = vmatpush2.msra.mxu0 0.0
  %1068 = vmatprep.mubr.f32.mxu0 0.0
  %1069 = vmatmul.mubr.f32.gmra.mxu0 %v1002
  %v1070 = vpop.f32.mrf.mxu0
  %v1071 = vadd.f32 0.0, %v1070
  %v1072 = vpop.f32.mrf.mxu0
  %1073 = vdwg.mxu0
  %v1074 = vadd.f32 %v760, %v1071
  %v1075 = vtanh.pop %v1074
  %v1077 = vsel %vm108, %v1075, 0
  %1079 = vmatprep.subr.mxu0 0.0
  %1080 = vmatpush1.msra.mxu0 0.0
  %1081 = vmatprep.subr.mxu0 0.0
  %1082 = vmatpush1.msra.mxu0 0.0
  %1083 = vmatprep.subr.mxu0 0.0
  %1084 = vmatpush1.msra.mxu0 0.0
  %1085 = vmatprep.subr.mxu0 0.0
  %1086 = vmatpush1.msra.mxu0 0.0
  %1087 = vmatprep.subr.mxu0 0.0
  %1088 = vmatpush1.msra.mxu0 0.0
  %1089 = vmatprep.subr.mxu0 0.0
  %1090 = vmatpush1.msra.mxu0 0.0
  %1091 = vmatprep.subr.mxu0 0.0
  %1092 = vmatpush1.msra.mxu0 0.0
  %1093 = vmatprep.subr.mxu0 0.0
  %1094 = vmatpush1.msra.mxu0 0.0
  %1095 = vmatprep.subr.mxu0 0.0
  %1096 = vmatpush1.msra.mxu0 0.0
  %1097 = vmatprep.subr.mxu0 0.0
  %1098 = vmatpush1.msra.mxu0 0.0
  %1099 = vmatprep.subr.mxu0 0.0
  %1100 = vmatpush1.msra.mxu0 0.0
  %1101 = vmatprep.subr.mxu0 0.0
  %1102 = vmatpush1.msra.mxu0 0.0
  %1103 = vmatprep.subr.mxu0 0.0
  %1104 = vmatpush1.msra.mxu0 %v676
  %1105 = vmatprep.subr.mxu0 0.0
  %1106 = vmatpush1.msra.mxu0 %v675
  %1107 = vmatprep.subr.mxu0 0.0
  %1108 = vmatpush1.msra.mxu0 %v674
  %1109 = vmatprep.subr.mxu0 0.0
  %1110 = vmatpush1.msra.mxu0 %v673
  %1111 = vmatprep.subr.mxu0 0.0
  %1112 = vmatpush2.msra.mxu0 0.0
  %1113 = vmatprep.subr.mxu0 0.0
  %1114 = vmatpush2.msra.mxu0 0.0
  %1115 = vmatprep.subr.mxu0 0.0
  %1116 = vmatpush2.msra.mxu0 0.0
  %1117 = vmatprep.subr.mxu0 0.0
  %1118 = vmatpush2.msra.mxu0 0.0
  %1119 = vmatprep.subr.mxu0 0.0
  %1120 = vmatpush2.msra.mxu0 0.0
  %1121 = vmatprep.subr.mxu0 0.0
  %1122 = vmatpush2.msra.mxu0 0.0
  %1123 = vmatprep.subr.mxu0 0.0
  %1124 = vmatpush2.msra.mxu0 0.0
  %1125 = vmatprep.subr.mxu0 0.0
  %1126 = vmatpush2.msra.mxu0 0.0
  %1127 = vmatprep.subr.mxu0 0.0
  %1128 = vmatpush2.msra.mxu0 0.0
  %1129 = vmatprep.subr.mxu0 0.0
  %1130 = vmatpush2.msra.mxu0 0.0
  %1131 = vmatprep.subr.mxu0 0.0
  %1132 = vmatpush2.msra.mxu0 0.0
  %1133 = vmatprep.subr.mxu0 0.0
  %1134 = vmatpush2.msra.mxu0 0.0
  %1135 = vmatprep.subr.mxu0 0.0
  %1136 = vmatpush2.msra.mxu0 0.0
  %1137 = vmatprep.subr.mxu0 0.0
  %1138 = vmatpush2.msra.mxu0 0.0
  %1139 = vmatprep.subr.mxu0 0.0
  %1140 = vmatpush2.msra.mxu0 0.0
  %1141 = vmatprep.subr.mxu0 0.0
  %1142 = vmatpush2.msra.mxu0 0.0
  %1143 = vmatprep.mubr.f32.mxu0 0.0
  %1144 = vmatmul.mubr.f32.gmra.mxu0 %v1077
  %v1145 = vpop.f32.mrf.mxu0
  %v1146 = vadd.f32 0.0, %v1145
  %v1147 = vpop.f32.mrf.mxu0
  %1148 = vdwg.mxu0
  %v1150 = vrot.slane %v1146, 6
  %v1152 = vadd.f32 %v760, %v1150
  %v1153 = vtanh.pop %v1152
  %v1155 = vrot.slane %v1153, 2
  %v1156 = vsel %vm108, %v1155, 0
  %1158 = vmatprep.subr.mxu0 0.0
  %1159 = vmatpush1.msra.mxu0 0.0
  %1160 = vmatprep.subr.mxu0 0.0
  %1161 = vmatpush1.msra.mxu0 0.0
  %1162 = vmatprep.subr.mxu0 0.0
  %1163 = vmatpush1.msra.mxu0 0.0
  %1164 = vmatprep.subr.mxu0 0.0
  %1165 = vmatpush1.msra.mxu0 0.0
  %1166 = vmatprep.subr.mxu0 0.0
  %1167 = vmatpush1.msra.mxu0 0.0
  %1168 = vmatprep.subr.mxu0 0.0
  %1169 = vmatpush1.msra.mxu0 0.0
  %1170 = vmatprep.subr.mxu0 0.0
  %1171 = vmatpush1.msra.mxu0 0.0
  %1172 = vmatprep.subr.mxu0 0.0
  %1173 = vmatpush1.msra.mxu0 0.0
  %1174 = vmatprep.subr.mxu0 0.0
  %1175 = vmatpush1.msra.mxu0 0.0
  %1176 = vmatprep.subr.mxu0 0.0
  %1177 = vmatpush1.msra.mxu0 0.0
  %1178 = vmatprep.subr.mxu0 0.0
  %1179 = vmatpush1.msra.mxu0 0.0
  %1180 = vmatprep.subr.mxu0 0.0
  %1181 = vmatpush1.msra.mxu0 0.0
  %1182 = vmatprep.subr.mxu0 0.0
  %1183 = vmatpush1.msra.mxu0 %v676
  %1184 = vmatprep.subr.mxu0 0.0
  %1185 = vmatpush1.msra.mxu0 %v675
  %1186 = vmatprep.subr.mxu0 0.0
  %1187 = vmatpush1.msra.mxu0 %v674
  %1188 = vmatprep.subr.mxu0 0.0
  %1189 = vmatpush1.msra.mxu0 %v673
  %1190 = vmatprep.subr.mxu0 0.0
  %1191 = vmatpush2.msra.mxu0 0.0
  %1192 = vmatprep.subr.mxu0 0.0
  %1193 = vmatpush2.msra.mxu0 0.0
  %1194 = vmatprep.subr.mxu0 0.0
  %1195 = vmatpush2.msra.mxu0 0.0
  %1196 = vmatprep.subr.mxu0 0.0
  %1197 = vmatpush2.msra.mxu0 0.0
  %1198 = vmatprep.subr.mxu0 0.0
  %1199 = vmatpush2.msra.mxu0 0.0
  %1200 = vmatprep.subr.mxu0 0.0
  %1201 = vmatpush2.msra.mxu0 0.0
  %1202 = vmatprep.subr.mxu0 0.0
  %1203 = vmatpush2.msra.mxu0 0.0
  %1204 = vmatprep.subr.mxu0 0.0
  %1205 = vmatpush2.msra.mxu0 0.0
  %1206 = vmatprep.subr.mxu0 0.0
  %1207 = vmatpush2.msra.mxu0 0.0
  %1208 = vmatprep.subr.mxu0 0.0
  %1209 = vmatpush2.msra.mxu0 0.0
  %1210 = vmatprep.subr.mxu0 0.0
  %1211 = vmatpush2.msra.mxu0 0.0
  %1212 = vmatprep.subr.mxu0 0.0
  %1213 = vmatpush2.msra.mxu0 0.0
  %1214 = vmatprep.subr.mxu0 0.0
  %1215 = vmatpush2.msra.mxu0 0.0
  %1216 = vmatprep.subr.mxu0 0.0
  %1217 = vmatpush2.msra.mxu0 0.0
  %1218 = vmatprep.subr.mxu0 0.0
  %1219 = vmatpush2.msra.mxu0 0.0
  %1220 = vmatprep.subr.mxu0 0.0
  %1221 = vmatpush2.msra.mxu0 0.0
  %1222 = vmatprep.mubr.f32.mxu0 0.0
  %1223 = vmatmul.mubr.f32.gmra.mxu0 %v1156
  %v1224 = vpop.f32.mrf.mxu0
  %v1225 = vadd.f32 0.0, %v1224
  %v1226 = vpop.f32.mrf.mxu0
  %1227 = vdwg.mxu0
  %v1229 = vrot.slane %v1225, 4
  %v1231 = vadd.f32 %v760, %v1229
  %v1232 = vtanh.pop %v1231
  %v1234 = vrot.slane %v1232, 4
  %v1235 = vsel %vm108, %v1234, 0
  %1237 = vmatprep.subr.mxu0 0.0
  %1238 = vmatpush1.msra.mxu0 0.0
  %1239 = vmatprep.subr.mxu0 0.0
  %1240 = vmatpush1.msra.mxu0 0.0
  %1241 = vmatprep.subr.mxu0 0.0
  %1242 = vmatpush1.msra.mxu0 0.0
  %1243 = vmatprep.subr.mxu0 0.0
  %1244 = vmatpush1.msra.mxu0 0.0
  %1245 = vmatprep.subr.mxu0 0.0
  %1246 = vmatpush1.msra.mxu0 0.0
  %1247 = vmatprep.subr.mxu0 0.0
  %1248 = vmatpush1.msra.mxu0 0.0
  %1249 = vmatprep.subr.mxu0 0.0
  %1250 = vmatpush1.msra.mxu0 0.0
  %1251 = vmatprep.subr.mxu0 0.0
  %1252 = vmatpush1.msra.mxu0 0.0
  %1253 = vmatprep.subr.mxu0 0.0
  %1254 = vmatpush1.msra.mxu0 0.0
  %1255 = vmatprep.subr.mxu0 0.0
  %1256 = vmatpush1.msra.mxu0 0.0
  %1257 = vmatprep.subr.mxu0 0.0
  %1258 = vmatpush1.msra.mxu0 0.0
  %1259 = vmatprep.subr.mxu0 0.0
  %1260 = vmatpush1.msra.mxu0 0.0
  %1261 = vmatprep.subr.mxu0 0.0
  %1262 = vmatpush1.msra.mxu0 %v676
  %1263 = vmatprep.subr.mxu0 0.0
  %1264 = vmatpush1.msra.mxu0 %v675
  %1265 = vmatprep.subr.mxu0 0.0
  %1266 = vmatpush1.msra.mxu0 %v674
  %1267 = vmatprep.subr.mxu0 0.0
  %1268 = vmatpush1.msra.mxu0 %v673
  %1269 = vmatprep.subr.mxu0 0.0
  %1270 = vmatpush2.msra.mxu0 0.0
  %1271 = vmatprep.subr.mxu0 0.0
  %1272 = vmatpush2.msra.mxu0 0.0
  %1273 = vmatprep.subr.mxu0 0.0
  %1274 = vmatpush2.msra.mxu0 0.0
  %1275 = vmatprep.subr.mxu0 0.0
  %1276 = vmatpush2.msra.mxu0 0.0
  %1277 = vmatprep.subr.mxu0 0.0
  %1278 = vmatpush2.msra.mxu0 0.0
  %1279 = vmatprep.subr.mxu0 0.0
  %1280 = vmatpush2.msra.mxu0 0.0
  %1281 = vmatprep.subr.mxu0 0.0
  %1282 = vmatpush2.msra.mxu0 0.0
  %1283 = vmatprep.subr.mxu0 0.0
  %1284 = vmatpush2.msra.mxu0 0.0
  %1285 = vmatprep.subr.mxu0 0.0
  %1286 = vmatpush2.msra.mxu0 0.0
  %1287 = vmatprep.subr.mxu0 0.0
  %1288 = vmatpush2.msra.mxu0 0.0
  %1289 = vmatprep.subr.mxu0 0.0
  %1290 = vmatpush2.msra.mxu0 0.0
  %1291 = vmatprep.subr.mxu0 0.0
  %1292 = vmatpush2.msra.mxu0 0.0
  %1293 = vmatprep.subr.mxu0 0.0
  %1294 = vmatpush2.msra.mxu0 0.0
  %1295 = vmatprep.subr.mxu0 0.0
  %1296 = vmatpush2.msra.mxu0 0.0
  %1297 = vmatprep.subr.mxu0 0.0
  %1298 = vmatpush2.msra.mxu0 0.0
  %1299 = vmatprep.subr.mxu0 0.0
  %1300 = vmatpush2.msra.mxu0 0.0
  %1301 = vmatprep.mubr.f32.mxu0 0.0
  %1302 = vmatmul.mubr.f32.gmra.mxu0 %v1235
  %v1303 = vpop.f32.mrf.mxu0
  %v1304 = vadd.f32 0.0, %v1303
  %v1305 = vpop.f32.mrf.mxu0
  %1306 = vdwg.mxu0
  %v1308 = vrot.slane %v1304, 2
  %v1310 = vadd.f32 %v760, %v1308
  %v1311 = vtanh.pop %v1310
  %v1312 = vld [vmem:[%s1 + $0x78] sm:$0x1]
  %v1313 = vld [vmem:[%s1 + $0x80] sm:$0x1]
  %v1314 = vlaneseq
  %v1315 = vshrl.u32 %v1314, 7
  %v1316 = vsub.s32 0, %v1315
  %v1317 = vrot.slane %v1312, %v1316
  %v1318 = vmul.f32 %v1311, %v1317
  %v1319 = vsel %vm349, %v1318, 0.0
  %1320 = vadd.xlane.f32.xlu0 %v1319
  %v1321 = vpop.xlane.xlu0 %1320
  %v1322 = vlaneseq
  %v1323 = vshrl.u32 %v1322, 7
  %v1324 = vsub.s32 0, %v1323
  %v1325 = vrot.slane %v1313, %v1324
  %v1326 = vadd.f32 %v1321, %v1325
  %v1327 = vxor.u32 %v1326, 2147483648
  %v1328 = vmul.f32 %v1327, 1.442695
  %v1329 = vpow.pop %v1328
  %v1330 = vadd.f32 %v1329, 1.0
  %v1331 = vrcp.pop %v1330
  %v1332 = vmul.f32 1.0, %v1331
  %vm1333 = vcmask 7174
  %1334 = vst.msk [vmem:[%s2 - $0x6] sm:$0xc0] %vm1333, %v1332
  // Predicated region
  $region10: #{tpu_custom_call.1} parent=0 // pred_check
    _
  $region11: #{tpu_custom_call.1} parent=0 // pred_check_branch
    %1336 = sbr.rel (0) target = $region13
  $region12: #{tpu_custom_call.1} parent=0 // pred_region
    _
  $region13: #{tpu_custom_call.1} parent=0 // pred_fallthru
    _
  // Predicated region
  $region14: #{tpu_custom_call.1} parent=0 // pred_check
    _
  $region15: #{tpu_custom_call.1} parent=0 // pred_check_branch
    %1338 = sbr.rel (0) target = $region17
  $region16: #{tpu_custom_call.1} parent=0 // pred_region
    _
  $region17: #{tpu_custom_call.1} parent=0 // pred_fallthru
    _

</llo_original>
